<compile_context>
chip_gen: v6e
topology: v6e:2x2x1
jax: 0.10.0
libtpu: 0.0.40
codegen_flags: <defaults>
</compile_context>

<pallas_src>
import functools

import jax
import jax.numpy as jnp
import numpy as np
from jax.experimental import pallas as pl
from jax.experimental.pallas import tpu as pltpu


# ----------------------------------------------------------------------------
# Kernel: for query tile i and key tile k, compute exp(sim) on the MXU/EUP,
# accumulate lane-dense column sums of the masked ("positive") and total values
# across the key axis (via ones-vector MXU reductions), and on the last key
# step emit per-query-tile partial scalars (broadcast over 128 lanes).
# ----------------------------------------------------------------------------
def _supcon_kernel(f1_ref, f2_ref, g1_ref, g2_ref, pos_ref, tot_ref,
                   pos_acc, tot_acc, *, exp_dtype):
    k = pl.program_id(1)

    @pl.when(k == 0)
    def _init():
        pos_acc[...] = jnp.zeros_like(pos_acc)
        tot_acc[...] = jnp.zeros_like(tot_acc)

    f1 = f1_ref[...]        # (C, tm); 1/temperature already folded in (wrapper)
    f2 = f2_ref[...]        # (C, tn)

    # (C, tm) x (C, tn) contracted over C (sublane axis) -> (tm, tn).
    # Emit directly in the exp dtype (bf16 on v6e/v7x) so no extra (tm, tn)
    # VPU cast pass is needed before exp; MXU still accumulates in f32.
    sim_dtype = jnp.promote_types(f1.dtype, exp_dtype)
    sim = jax.lax.dot_general(
        f1, f2,
        dimension_numbers=(((0,), (0,)), ((), ())),
        preferred_element_type=sim_dtype,
    )

    e = jnp.exp(sim.astype(exp_dtype))          # EUP; bf16 on v6e/v7x

    # Positive entries: compare + select (single VPU pass), no bool->f32 cast,
    # no multiply. g1: (tm, 1) query labels, g2: (1, tn) key labels.
    e_pos = jnp.where(g1_ref[...] == g2_ref[...], e, jnp.zeros_like(e))

    # Offload the (tm -> 1) sublane reductions to the MXU (it has huge slack
    # because the main contraction is only over C): ones(1, tm) @ (tm, tn),
    # f32 accumulation. Lane-dense (1, tn) running sums; the single cross-lane
    # reduce is deferred to the key-loop finalize step.
    ones_row = jnp.ones((1, e.shape[0]), e.dtype)
    tot_acc[...] += jax.lax.dot_general(
        ones_row, e,
        dimension_numbers=(((1,), (0,)), ((), ())),
        preferred_element_type=jnp.float32)
    pos_acc[...] += jax.lax.dot_general(
        ones_row, e_pos,
        dimension_numbers=(((1,), (0,)), ((), ())),
        preferred_element_type=jnp.float32)

    @pl.when(k == pl.num_programs(1) - 1)
    def _finalize():
        ones = jnp.ones(pos_ref.shape, jnp.float32)
        pos_ref[...] = ones * jnp.sum(pos_acc[...])
        tot_ref[...] = ones * jnp.sum(tot_acc[...])


# ----------------------------------------------------------------------------
# Glue: label prep (unsqueeze / nearest resize, matching F.interpolate nearest),
# layout prep, per-generation tiling, the pallas_call, and a tiny JAX epilogue.
# ----------------------------------------------------------------------------
def _nearest_resize(label, size):
    # PyTorch F.interpolate(mode='nearest'): src_idx = floor(dst_idx * in/out)
    _, _, h, w = label.shape
    H, W = size
    rows = (jnp.arange(H) * h // H).astype(jnp.int32)
    cols = (jnp.arange(W) * w // W).astype(jnp.int32)
    return label[:, :, rows][:, :, :, cols]


def _prep(x, label, feat_dtype, scale=1.0):
    B, C, H, W = x.shape
    if label.ndim == 3:
        label = label[:, None]                       # (B,1,h,w)
    label = label.astype(jnp.float32)
    if label.shape[-2:] != (H, W):
        label = _nearest_resize(label, (H, W))
    HW = H * W
    # d3tod2 is 'c h w -> (h w) c'; we keep the transposed (C, HW) layout so HW
    # is lane-dense -- it is just a reshape of the NCHW slice (no transpose).
    f1 = x[0].reshape(C, HW)
    if scale != 1.0:
        f1 = f1 * jnp.asarray(scale, f1.dtype)       # fold 1/T here (hoisted)
    feat1 = f1.astype(feat_dtype)
    feat2 = x[1].reshape(C, HW).astype(feat_dtype)
    gt1 = label[0].reshape(HW, 1)                    # query labels (sublanes)
    gt2 = label[1].reshape(1, HW)                    # key labels (lane-dense)
    return feat1, feat2, gt1, gt2, HW, C


def _pick_tile(HW, target):
    """Largest tile <= target that divides HW and is 128-aligned (or HW)."""
    target = max(1, min(target, HW))
    if target == HW:
        return HW
    best = None
    t = 128
    while t <= target:
        if HW % t == 0:
            best = t
        t += 128
    return best if best is not None else HW


def _device_defaults(HW):
    try:
        kind = jax.devices()[0].device_kind.lower()
    except Exception:
        kind = ""
    is_v5e = ("v5 lite" in kind) or ("v5e" in kind) or ("v5lite" in kind)
    is_v7 = "v7" in kind
    is_v6 = "v6" in kind
    if is_v7:
        # 64 MiB VMEM/TC: keep tm*tn <= ~2M f32 elems and >= 2 query tiles so
        # both TensorCores get work on the "parallel" query axis.
        tm = _pick_tile(HW, min(1024, max(128, HW // 2)))
        tn = _pick_tile(HW, 2048)
        vmem_cap = 56 << 20
        exp_dtype = jnp.bfloat16
    elif is_v6:
        tm = _pick_tile(HW, 1024)
        tn = _pick_tile(HW, 4096)
        vmem_cap = 100 << 20
        exp_dtype = jnp.bfloat16
    elif is_v5e:
        tm = _pick_tile(HW, 1024)
        tn = _pick_tile(HW, 4096)
        vmem_cap = 100 << 20
        exp_dtype = jnp.float32          # no bf16 VPU/EUP on v5e
    else:
        # Unknown chip: conservative (v7x-safe) settings.
        tm = _pick_tile(HW, min(1024, max(128, HW // 2)))
        tn = _pick_tile(HW, 2048)
        vmem_cap = 48 << 20
        exp_dtype = jnp.bfloat16
    return tm, tn, vmem_cap, exp_dtype


def supcon_loss(x, label, temperature=0.04, *, tm=None, tn=None,
                feat_dtype=jnp.bfloat16, exp_dtype=None):
    assert x.shape[0] > 2, (
        "supervised contrastive loss can be computed when batch size is larger than 2")

    H, W = x.shape[2], x.shape[3]
    HW = H * W
    tm_d, tn_d, vmem_cap, exp_d = _device_defaults(HW)
    if tm is None:
        tm = tm_d
    if tn is None:
        tn = tn_d
    if exp_dtype is None:
        exp_dtype = exp_d

    # 1/temperature folded into the query features (hoisted out of the key loop).
    feat1, feat2, gt1, gt2, HW, C = _prep(
        x, label, feat_dtype, scale=1.0 / temperature)

    tm = min(tm, HW)
    tn = min(tn, HW)
    assert HW % tm == 0 and HW % tn == 0, "HW must be divisible by the tiles"
    assert tm == HW or tm % 128 == 0, "query tile must be a multiple of 128"
    assert tn == HW or tn % 128 == 0, "key tile must be a multiple of 128"
    n_qt, n_kt = HW // tm, HW // tn

    # Explicit scoped-VMEM budget (double-buffered operands + intermediates).
    c_pad = max(8, C)
    fb = jnp.dtype(feat_dtype).itemsize
    eb = jnp.dtype(exp_dtype).itemsize
    est = (2 * c_pad * tm * fb + 2 * c_pad * tn * fb   # f1 / f2 tiles
           + 2 * tm * 128 * 4 + 2 * 8 * tn * 4         # g1 / g2 tiles (padded)
           + 4 * tm * tn * eb                          # sim / e / e_pos / mask temps
           + 2 * 8 * tn * 4                            # column-sum accumulators
           + 4 * 8 * 128 * 4)                          # partial-sum outputs
    vmem_limit = int(min(max(est * 3 // 2 + (8 << 20), 32 << 20), vmem_cap))

    kernel = functools.partial(_supcon_kernel, exp_dtype=exp_dtype)

    pos_part, tot_part = pl.pallas_call(
        kernel,
        out_shape=(jax.ShapeDtypeStruct((n_qt, 1, 128), jnp.float32),
                   jax.ShapeDtypeStruct((n_qt, 1, 128), jnp.float32)),
        grid_spec=pltpu.PrefetchScalarGridSpec(
            num_scalar_prefetch=0,
            grid=(n_qt, n_kt),
            in_specs=[
                pl.BlockSpec((C, tm), lambda i, k: (0, i)),   # query features
                pl.BlockSpec((C, tn), lambda i, k: (0, k)),   # key features
                pl.BlockSpec((tm, 1), lambda i, k: (i, 0)),   # query labels
                pl.BlockSpec((1, tn), lambda i, k: (0, k)),   # key labels
            ],
            out_specs=(
                pl.BlockSpec((1, 1, 128), lambda i, k: (i, 0, 0)),  # pos partials
                pl.BlockSpec((1, 1, 128), lambda i, k: (i, 0, 0)),  # tot partials
            ),
            scratch_shapes=[
                pltpu.VMEM((1, tn), jnp.float32),   # positive column-sum accumulator
                pltpu.VMEM((1, tn), jnp.float32),   # total column-sum accumulator
            ],
        ),
        compiler_params=pltpu.CompilerParams(
            dimension_semantics=("parallel", "arbitrary"),
            vmem_limit_bytes=vmem_limit),
    )(feat1, feat2, gt1, gt2)

    # Tiny final reduction + log in plain JAX (keeps the kernel grid
    # embarrassingly parallel; each tile wrote its scalar broadcast over lanes).
    pos = jnp.sum(pos_part[:, 0, 0])
    tot = jnp.sum(tot_part[:, 0, 0])
    return -jnp.log(pos / tot) / float(HW * HW)


# Pure-JAX reference (mirrors the PyTorch forward, all f32) for correctness checks.
def supcon_loss_ref(x, label, temperature=0.04):
    feat1, feat2, gt1, gt2, HW, _ = _prep(x, label, jnp.float32)
    sim = jnp.exp(
        jax.lax.dot_general(feat1, feat2,
                            dimension_numbers=(((0,), (0,)), ((), ())))
        / temperature)
    mask = gt1 == gt2
    return -jnp.log(jnp.sum(jnp.where(mask, sim, 0.0)) / jnp.sum(sim)) / (HW * HW)


if __name__ == "__main__":
    key = jax.random.PRNGKey(0)
    kx, kl = jax.random.split(key)

    B, C, H, W = 4, 4, 32, 32          # batch must be > 2
    # small-magnitude features so exp(sim / 0.04) stays well inside f32 range
    x = 0.05 * jax.random.normal(kx, (B, C, H, W), dtype=jnp.float32)
    # labels at half resolution with ndim == 3: exercises unsqueeze + nearest resize
    label = jax.random.randint(kl, (B, H // 2, W // 2), 0, 2).astype(jnp.float32)

    ref = jax.block_until_ready(supcon_loss_ref(x, label))

    # Exact path (f32 features + f32 exp); tiles chosen so BOTH grid axes run
    # multiple steps (query tiles x key tiles).
    loss_exact = jax.block_until_ready(
        supcon_loss(x, label, tm=256, tn=512,
                    feat_dtype=jnp.float32, exp_dtype=jnp.float32))
    np.testing.assert_allclose(np.asarray(loss_exact), np.asarray(ref),
                               rtol=2e-3, atol=1e-10)

    # Fast path (per-device defaults): bf16 features into the MXU, bf16 exp on
    # v6e/v7x, f32 exp on v5e.
    loss_fast = jax.block_until_ready(supcon_loss(x, label))
    np.testing.assert_allclose(np.asarray(loss_fast), np.asarray(ref),
                               rtol=5e-2, atol=1e-10)

    print("KERNEL_OK")
</pallas_src>

<mosaic_0001>
module attributes {stable_mosaic.version = 11 : i64} {
  func.func @_supcon_kernel(%arg0: i32, %arg1: i32, %arg2: memref<4x256xf32, #tpu.memory_space<vmem>>, %arg3: memref<4x512xf32, #tpu.memory_space<vmem>>, %arg4: memref<256x1xf32, #tpu.memory_space<vmem>>, %arg5: memref<1x512xf32, #tpu.memory_space<vmem>>, %arg6: memref<1x1x128xf32, #tpu.memory_space<vmem>>, %arg7: memref<1x1x128xf32, #tpu.memory_space<vmem>>, %arg8: memref<1x512xf32, #tpu.memory_space<vmem>>, %arg9: memref<1x512xf32, #tpu.memory_space<vmem>>) attributes {dimension_semantics = [#tpu.dimension_semantics<parallel>, #tpu.dimension_semantics<arbitrary>], iteration_bounds = array<i64: 4, 2>, scalar_prefetch = 0 : i64, scratch_operands = 2 : i64, tpu.core_type = #tpu.core_type<tc>, window_params = [{transform_indices = @transform_0, window_bounds = array<i64: 4, 256>}, {transform_indices = @transform_1, window_bounds = array<i64: 4, 512>}, {transform_indices = @transform_2, window_bounds = array<i64: 256, 1>}, {transform_indices = @transform_3, window_bounds = array<i64: 1, 512>}, {transform_indices = @transform_4, window_bounds = array<i64: 1, 1, 128>}, {transform_indices = @transform_5, window_bounds = array<i64: 1, 1, 128>}]} {
    %c0_i32 = arith.constant 0 : i32
    %0 = arith.cmpi eq, %arg1, %c0_i32 : i32
    %1 = arith.extui %0 : i1 to i32
    %c0_i32_0 = arith.constant 0 : i32
    %2 = arith.cmpi ne, %1, %c0_i32_0 : i32
    scf.if %2 {
      %cst_21 = arith.constant 0.000000e+00 : f32
      %26 = vector.broadcast %cst_21 : f32 to vector<1x512xf32>
      %c0_22 = arith.constant 0 : index
      %c0_23 = arith.constant 0 : index
      %27 = vector.load %arg8[%c0_22, %c0_23] : memref<1x512xf32, #tpu.memory_space<vmem>>, vector<1x512xf32>
      tpu.vector_store %arg8[%c0_22, %c0_23], %26 {strides = array<i32>} : memref<1x512xf32, #tpu.memory_space<vmem>>, vector<1x512xf32>,
      %cst_24 = arith.constant 0.000000e+00 : f32
      %28 = vector.broadcast %cst_24 : f32 to vector<1x512xf32>
      %c0_25 = arith.constant 0 : index
      %c0_26 = arith.constant 0 : index
      %29 = vector.load %arg9[%c0_25, %c0_26] : memref<1x512xf32, #tpu.memory_space<vmem>>, vector<1x512xf32>
      tpu.vector_store %arg9[%c0_25, %c0_26], %28 {strides = array<i32>} : memref<1x512xf32, #tpu.memory_space<vmem>>, vector<1x512xf32>,
    } else {
    }
    %c0 = arith.constant 0 : index
    %c0_1 = arith.constant 0 : index
    %3 = vector.load %arg2[%c0, %c0_1] : memref<4x256xf32, #tpu.memory_space<vmem>>, vector<4x256xf32>
    %c0_2 = arith.constant 0 : index
    %c0_3 = arith.constant 0 : index
    %4 = vector.load %arg3[%c0_2, %c0_3] : memref<4x512xf32, #tpu.memory_space<vmem>>, vector<4x512xf32>
    %cst = arith.constant dense<0.000000e+00> : vector<256x512xf32>
    %5 = tpu.matmul %3, %4, %cst {dimension_numbers = #tpu.dot_dimension_numbers<[0], [0], [1], [1], [0, 1, 1, 1], [], []>} : vector<4x256xf32>, vector<4x512xf32>, vector<256x512xf32> -> vector<256x512xf32>
    %6 = math.exp %5 : vector<256x512xf32>
    %c0_4 = arith.constant 0 : index
    %c0_5 = arith.constant 0 : index
    %7 = vector.load %arg4[%c0_4, %c0_5] : memref<256x1xf32, #tpu.memory_space<vmem>>, vector<256x1xf32>
    %c0_6 = arith.constant 0 : index
    %c0_7 = arith.constant 0 : index
    %8 = vector.load %arg5[%c0_6, %c0_7] : memref<1x512xf32, #tpu.memory_space<vmem>>, vector<1x512xf32>
    %9 = vector.broadcast %7 : vector<256x1xf32> to vector<256x512xf32>
    %10 = vector.broadcast %8 : vector<1x512xf32> to vector<256x512xf32>
    %11 = arith.cmpf oeq, %9, %10 : vector<256x512xf32>
    %cst_8 = arith.constant 0.000000e+00 : f32
    %12 = vector.broadcast %cst_8 : f32 to vector<256x512xf32>
    %13 = arith.select %11, %6, %12 : vector<256x512xi1>, vector<256x512xf32>
    %cst_9 = arith.constant 1.000000e+00 : f32
    %14 = vector.broadcast %cst_9 : f32 to vector<1x256xf32>
    %c0_10 = arith.constant 0 : index
    %c0_11 = arith.constant 0 : index
    %15 = vector.load %arg9[%c0_10, %c0_11] : memref<1x512xf32, #tpu.memory_space<vmem>>, vector<1x512xf32>
    %cst_12 = arith.constant dense<0.000000e+00> : vector<1x512xf32>
    %16 = tpu.matmul %14, %6, %cst_12 {dimension_numbers = #tpu.dot_dimension_numbers<[1], [0], [0], [1], [0, 0, 1, 1], [], []>} : vector<1x256xf32>, vector<256x512xf32>, vector<1x512xf32> -> vector<1x512xf32>
    %17 = arith.addf %15, %16 : vector<1x512xf32>
    %c0_13 = arith.constant 0 : index
    %c0_14 = arith.constant 0 : index
    %18 = vector.load %arg9[%c0_13, %c0_14] : memref<1x512xf32, #tpu.memory_space<vmem>>, vector<1x512xf32>
    tpu.vector_store %arg9[%c0_13, %c0_14], %17 {strides = array<i32>} : memref<1x512xf32, #tpu.memory_space<vmem>>, vector<1x512xf32>,
    %c0_15 = arith.constant 0 : index
    %c0_16 = arith.constant 0 : index
    %19 = vector.load %arg8[%c0_15, %c0_16] : memref<1x512xf32, #tpu.memory_space<vmem>>, vector<1x512xf32>
    %cst_17 = arith.constant dense<0.000000e+00> : vector<1x512xf32>
    %20 = tpu.matmul %14, %13, %cst_17 {dimension_numbers = #tpu.dot_dimension_numbers<[1], [0], [0], [1], [0, 0, 1, 1], [], []>} : vector<1x256xf32>, vector<256x512xf32>, vector<1x512xf32> -> vector<1x512xf32>
    %21 = arith.addf %19, %20 : vector<1x512xf32>
    %c0_18 = arith.constant 0 : index
    %c0_19 = arith.constant 0 : index
    %22 = vector.load %arg8[%c0_18, %c0_19] : memref<1x512xf32, #tpu.memory_space<vmem>>, vector<1x512xf32>
    tpu.vector_store %arg8[%c0_18, %c0_19], %21 {strides = array<i32>} : memref<1x512xf32, #tpu.memory_space<vmem>>, vector<1x512xf32>,
    %c1_i32 = arith.constant 1 : i32
    %23 = arith.cmpi eq, %arg1, %c1_i32 : i32
    %24 = arith.extui %23 : i1 to i32
    %c0_i32_20 = arith.constant 0 : i32
    %25 = arith.cmpi ne, %24, %c0_i32_20 : i32
    scf.if %25 {
      %cst_21 = arith.constant 1.000000e+00 : f32
      %26 = vector.broadcast %cst_21 : f32 to vector<1x1x128xf32>
      %c0_22 = arith.constant 0 : index
      %c0_23 = arith.constant 0 : index
      %27 = vector.load %arg8[%c0_22, %c0_23] : memref<1x512xf32, #tpu.memory_space<vmem>>, vector<1x512xf32>
      %28 = vector.shape_cast %27 : vector<1x512xf32> to vector<1x1x512xf32>
      %cst_24 = arith.constant dense<0.000000e+00> : vector<1xf32>
      %29 = vector.multi_reduction <add>, %28, %cst_24 [1, 2] : vector<1x1x512xf32> to vector<1xf32>
      %30 = vector.shape_cast %29 : vector<1xf32> to vector<1x1x1xf32>
      %31 = vector.extract %30[0, 0, 0] : f32 from vector<1x1x1xf32>
      %32 = vector.broadcast %31 : f32 to vector<1x1x128xf32>
      %33 = arith.mulf %26, %32 : vector<1x1x128xf32>
      %c0_25 = arith.constant 0 : index
      %c0_26 = arith.constant 0 : index
      %c0_27 = arith.constant 0 : index
      %34 = vector.load %arg6[%c0_25, %c0_26, %c0_27] : memref<1x1x128xf32, #tpu.memory_space<vmem>>, vector<1x1x128xf32>
      tpu.vector_store %arg6[%c0_25, %c0_26, %c0_27], %33 {strides = array<i32>} : memref<1x1x128xf32, #tpu.memory_space<vmem>>, vector<1x1x128xf32>,
      %c0_28 = arith.constant 0 : index
      %c0_29 = arith.constant 0 : index
      %35 = vector.load %arg9[%c0_28, %c0_29] : memref<1x512xf32, #tpu.memory_space<vmem>>, vector<1x512xf32>
      %36 = vector.shape_cast %35 : vector<1x512xf32> to vector<1x1x512xf32>
      %cst_30 = arith.constant dense<0.000000e+00> : vector<1xf32>
      %37 = vector.multi_reduction <add>, %36, %cst_30 [1, 2] : vector<1x1x512xf32> to vector<1xf32>
      %38 = vector.shape_cast %37 : vector<1xf32> to vector<1x1x1xf32>
      %39 = vector.extract %38[0, 0, 0] : f32 from vector<1x1x1xf32>
      %40 = vector.broadcast %39 : f32 to vector<1x1x128xf32>
      %41 = arith.mulf %26, %40 : vector<1x1x128xf32>
      %c0_31 = arith.constant 0 : index
      %c0_32 = arith.constant 0 : index
      %c0_33 = arith.constant 0 : index
      %42 = vector.load %arg7[%c0_31, %c0_32, %c0_33] : memref<1x1x128xf32, #tpu.memory_space<vmem>>, vector<1x1x128xf32>
      tpu.vector_store %arg7[%c0_31, %c0_32, %c0_33], %41 {strides = array<i32>} : memref<1x1x128xf32, #tpu.memory_space<vmem>>, vector<1x1x128xf32>,
    } else {
    }
    return
  }
  func.func @transform_0(%arg0: i32, %arg1: i32) -> (i32, i32) {
    %c0_i32 = arith.constant 0 : i32
    %c0_i32_0 = arith.constant 0 : i32
    return %c0_i32, %arg0 : i32, i32
  }
  func.func @transform_1(%arg0: i32, %arg1: i32) -> (i32, i32) {
    %c0_i32 = arith.constant 0 : i32
    %c0_i32_0 = arith.constant 0 : i32
    return %c0_i32, %arg1 : i32, i32
  }
  func.func @transform_2(%arg0: i32, %arg1: i32) -> (i32, i32) {
    %c0_i32 = arith.constant 0 : i32
    %c0_i32_0 = arith.constant 0 : i32
    return %arg0, %c0_i32 : i32, i32
  }
  func.func @transform_3(%arg0: i32, %arg1: i32) -> (i32, i32) {
    %c0_i32 = arith.constant 0 : i32
    %c0_i32_0 = arith.constant 0 : i32
    return %c0_i32, %arg1 : i32, i32
  }
  func.func @transform_4(%arg0: i32, %arg1: i32) -> (i32, i32, i32) {
    %c0_i32 = arith.constant 0 : i32
    %c0_i32_0 = arith.constant 0 : i32
    %c0_i32_1 = arith.constant 0 : i32
    return %arg0, %c0_i32, %c0_i32_0 : i32, i32, i32
  }
  func.func @transform_5(%arg0: i32, %arg1: i32) -> (i32, i32, i32) {
    %c0_i32 = arith.constant 0 : i32
    %c0_i32_0 = arith.constant 0 : i32
    %c0_i32_1 = arith.constant 0 : i32
    return %arg0, %c0_i32, %c0_i32_0 : i32, i32, i32
  }
}

</mosaic_0001>

<llo_original>
// kernel: tpu_custom_call.1
$region0: #{tpu_custom_call.1}
  #allocation0 [shape = 'u32[]', space=smem, size = 0x4, offset = 0x4, fixed_abs, tag = 'smem constant byte address 0x4 - core index']
  #allocation1 [shape = 'u32[144,128]{1,0:T(1,128)}', space=vmem, size = 0x12000, scoped, tag = 'internal scratch']
  #allocation2 [shape = 'f32[1,512]{1,0:T(1,128)}', space=vmem, size = 0x800, scoped, tag = 'scratch operand']
  #allocation3 [shape = 'f32[1,512]{1,0:T(1,128)}', space=vmem, size = 0x800, scoped, tag = 'scratch operand']
  %s0 = inlined_call_operand.vmem [shape: f32[4,1024], index: 0, kind: input, shape index: {}]
  %s1 = inlined_call_operand.vmem [shape: f32[4,1024], index: 1, kind: input, shape index: {}]
  %s2 = inlined_call_operand.vmem [shape: f32[1024,1], index: 2, kind: input, shape index: {}]
  %s3 = inlined_call_operand.vmem [shape: f32[1,1024], index: 3, kind: input, shape index: {}]
  %s4 = inlined_call_operand.hbm [shape: f32[4,1,128], index: 4, kind: output, shape index: {0}]
  %s5 = inlined_call_operand.hbm [shape: f32[4,1,128], index: 5, kind: output, shape index: {1}]
  %6 = xla_tuple %s4, %s5
  %s7 = sld [smem:[#allocation0]]
  $region65: #{tpu_custom_call.1} parent=0
    _
  %s9 = ssub.s32 1, %s7
  %s10 = scalar_select 0, %s9, %s7
  $region1: #{tpu_custom_call.1} parent=0
    #allocation4 [shape = 'u8[1024]{0}', space=vmem, size = 0x400, scoped, tag = 'output window, operand 0']
    #allocation5 [shape = 's32[2]{0}', space=sflag, size = 0x8, scoped, tag = 'scoped memory for tpu_custom_call.1']
    #allocation6 [shape = 'u8[1024]{0}', space=vmem, size = 0x400, scoped, tag = 'output window, operand 1']
    #allocation7 [shape = 's32[2]{0}', space=sflag, size = 0x8, scoped, tag = 'scoped memory for tpu_custom_call.1']
    %11 = vsyncpa [#allocation5], 0
    %s12 = scalar_lea.sflag [#allocation5], 1
    %13 = vsyncpa %s12, 0
    %14 = vsyncpa [#allocation7], 0
    %s15 = scalar_lea.sflag [#allocation7], 1
    %16 = vsyncpa %s15, 0
    loop: start=0, step=1, limit=10
    $region2: #{tpu_custom_call.1} parent=1 // loop_pre_header
      _
    $region3: #{tpu_custom_call.1} parent=1 // loop_header
      %s18 = sphi 0, %s22
      %p19 = scmp.ge.s32.totalorder %s18, 10
      %s25 = sphi 0, %s37
      %s26 = sphi 0, %s33
      %s27 = sphi 0, %s25
      %s28 = sphi 0, %s26
      %s29 = sphi 0, %s27
      %s30 = sphi 0, %s28
      %s40 = sphi 0, %s42
      %s43 = sphi 0, %s40
      %s44 = sphi 0, %s43
      %s60 = sphi 0, %s44
      %s66 = sphi 0, %s68
      %s69 = sphi 0, %s66
      %s70 = sphi 0, %s69
      %s86 = sphi 0, %s70
      %s92 = sphi 0, %s94
      %s95 = sphi 0, %s92
      %s96 = sphi 0, %s95
      %s112 = sphi 0, %s96
      %s118 = sphi 0, %s120
      %s121 = sphi 0, %s118
      %s122 = sphi 0, %s121
      %s138 = sphi 0, %s122
      %s144 = sphi 0, %s146
      %s147 = sphi 0, %s144
      %s148 = sphi 0, %s147
      %s164 = sphi 0, %s148
      %s170 = sphi 0, %s172
      %s173 = sphi 0, %s170
      %s174 = sphi 0, %s173
      %s190 = sphi 0, %s174
    $region4: #{tpu_custom_call.1} parent=1 // loop_header_branch
      %21 = sbr.rel (%p19) target = $region8
    $region5: #{tpu_custom_call.1} parent=1 // loop_body
      %s23 = ssub.s32 %s18, 1
      %s24 = ssub.s32 %s18, 2
      %s31 = sadd.s32 1, %s26
      %p32 = scmp.ge.s32.totalorder %s31, 2
      %s33 = scalar_select %p32, 0, %s31
      %s34 = sadd.s32 1, %s25
      %s35 = scalar_select %p32, %s34, %s25
      %p36 = scmp.ge.s32.totalorder %s35, 4
      %s37 = scalar_select %p36, 0, %s35
      %s38 = ssub.s32 %s25, %s37
      %p39 = scmp.eq.s32.totalorder %s38, 0
      %s41 = sadd.s32 %s40, 1
      %s42 = scalar_select %p39, %s40, %s41
      %p45 = pneg %p39
      %p46 = scmp.eq.s32.totalorder %s18, 7
      %p47 = por %p45, %p46
      %p48 = scmp.ne.s32.totalorder %s40, %s43
      %p49 = scmp.eq.s32.totalorder %s18, 0
      %p50 = por %p48, %p49
      %p51 = scmp.ne.s32.totalorder %s40, %s43
      %p52 = scmp.eq.s32.totalorder %s23, 7
      %p53 = por %p51, %p52
      %p54 = scmp.ne.s32.totalorder %s43, %s44
      %p55 = scmp.eq.s32.totalorder %s23, 0
      %p56 = por %p54, %p55
      %p57 = scmp.ne.s32.totalorder %s43, %s44
      %p58 = scmp.eq.s32.totalorder %s24, 7
      %p59 = por %p57, %p58
      %p61 = scmp.ne.s32.totalorder %s44, %s60
      %p62 = scmp.eq.s32.totalorder %s24, 0
      %p63 = por %p61, %p62
      %s64 = ssub.s32 %s26, %s33
      %p65 = scmp.eq.s32.totalorder %s64, 0
      %s67 = sadd.s32 %s66, 1
      %s68 = scalar_select %p65, %s66, %s67
      %p71 = pneg %p65
      %p72 = scmp.eq.s32.totalorder %s18, 7
      %p73 = por %p71, %p72
      %p74 = scmp.ne.s32.totalorder %s66, %s69
      %p75 = scmp.eq.s32.totalorder %s18, 0
      %p76 = por %p74, %p75
      %p77 = scmp.ne.s32.totalorder %s66, %s69
      %p78 = scmp.eq.s32.totalorder %s23, 7
      %p79 = por %p77, %p78
      %p80 = scmp.ne.s32.totalorder %s69, %s70
      %p81 = scmp.eq.s32.totalorder %s23, 0
      %p82 = por %p80, %p81
      %p83 = scmp.ne.s32.totalorder %s69, %s70
      %p84 = scmp.eq.s32.totalorder %s24, 7
      %p85 = por %p83, %p84
      %p87 = scmp.ne.s32.totalorder %s70, %s86
      %p88 = scmp.eq.s32.totalorder %s24, 0
      %p89 = por %p87, %p88
      %s90 = ssub.s32 %s25, %s37
      %p91 = scmp.eq.s32.totalorder %s90, 0
      %s93 = sadd.s32 %s92, 1
      %s94 = scalar_select %p91, %s92, %s93
      %p97 = pneg %p91
      %p98 = scmp.eq.s32.totalorder %s18, 7
      %p99 = por %p97, %p98
      %p100 = scmp.ne.s32.totalorder %s92, %s95
      %p101 = scmp.eq.s32.totalorder %s18, 0
      %p102 = por %p100, %p101
      %p103 = scmp.ne.s32.totalorder %s92, %s95
      %p104 = scmp.eq.s32.totalorder %s23, 7
      %p105 = por %p103, %p104
      %p106 = scmp.ne.s32.totalorder %s95, %s96
      %p107 = scmp.eq.s32.totalorder %s23, 0
      %p108 = por %p106, %p107
      %p109 = scmp.ne.s32.totalorder %s95, %s96
      %p110 = scmp.eq.s32.totalorder %s24, 7
      %p111 = por %p109, %p110
      %p113 = scmp.ne.s32.totalorder %s96, %s112
      %p114 = scmp.eq.s32.totalorder %s24, 0
      %p115 = por %p113, %p114
      %s116 = ssub.s32 %s26, %s33
      %p117 = scmp.eq.s32.totalorder %s116, 0
      %s119 = sadd.s32 %s118, 1
      %s120 = scalar_select %p117, %s118, %s119
      %p123 = pneg %p117
      %p124 = scmp.eq.s32.totalorder %s18, 7
      %p125 = por %p123, %p124
      %p126 = scmp.ne.s32.totalorder %s118, %s121
      %p127 = scmp.eq.s32.totalorder %s18, 0
      %p128 = por %p126, %p127
      %p129 = scmp.ne.s32.totalorder %s118, %s121
      %p130 = scmp.eq.s32.totalorder %s23, 7
      %p131 = por %p129, %p130
      %p132 = scmp.ne.s32.totalorder %s121, %s122
      %p133 = scmp.eq.s32.totalorder %s23, 0
      %p134 = por %p132, %p133
      %p135 = scmp.ne.s32.totalorder %s121, %s122
      %p136 = scmp.eq.s32.totalorder %s24, 7
      %p137 = por %p135, %p136
      %p139 = scmp.ne.s32.totalorder %s122, %s138
      %p140 = scmp.eq.s32.totalorder %s24, 0
      %p141 = por %p139, %p140
      %s142 = ssub.s32 %s25, %s37
      %p143 = scmp.eq.s32.totalorder %s142, 0
      %s145 = sadd.s32 %s144, 1
      %s146 = scalar_select %p143, %s144, %s145
      %p149 = pneg %p143
      %p150 = scmp.eq.s32.totalorder %s18, 7
      %p151 = por %p149, %p150
      %p152 = scmp.ne.s32.totalorder %s144, %s147
      %p153 = scmp.eq.s32.totalorder %s18, 0
      %p154 = por %p152, %p153
      %p155 = scmp.ne.s32.totalorder %s144, %s147
      %p156 = scmp.eq.s32.totalorder %s23, 7
      %p157 = por %p155, %p156
      %p158 = scmp.ne.s32.totalorder %s147, %s148
      %p159 = scmp.eq.s32.totalorder %s23, 0
      %p160 = por %p158, %p159
      %p161 = scmp.ne.s32.totalorder %s147, %s148
      %p162 = scmp.eq.s32.totalorder %s24, 7
      %p163 = por %p161, %p162
      %p165 = scmp.ne.s32.totalorder %s148, %s164
      %p166 = scmp.eq.s32.totalorder %s24, 0
      %p167 = por %p165, %p166
      %s168 = ssub.s32 %s25, %s37
      %p169 = scmp.eq.s32.totalorder %s168, 0
      %s171 = sadd.s32 %s170, 1
      %s172 = scalar_select %p169, %s170, %s171
      %p175 = pneg %p169
      %p176 = scmp.eq.s32.totalorder %s18, 7
      %p177 = por %p175, %p176
      %p178 = scmp.ne.s32.totalorder %s170, %s173
      %p179 = scmp.eq.s32.totalorder %s18, 0
      %p180 = por %p178, %p179
      %p181 = scmp.ne.s32.totalorder %s170, %s173
      %p182 = scmp.eq.s32.totalorder %s23, 7
      %p183 = por %p181, %p182
      %p184 = scmp.ne.s32.totalorder %s173, %s174
      %p185 = scmp.eq.s32.totalorder %s23, 0
      %p186 = por %p184, %p185
      %p187 = scmp.ne.s32.totalorder %s173, %s174
      %p188 = scmp.eq.s32.totalorder %s24, 7
      %p189 = por %p187, %p188
      %p191 = scmp.ne.s32.totalorder %s174, %s190
      %p192 = scmp.eq.s32.totalorder %s24, 0
      %p193 = por %p191, %p192
      %p194 = scmp.le.s32.totalorder 1, %s18
      %p195 = scmp.lt.s32.totalorder %s18, 9
      %p196 = pnand %p194, %p195
      %p197 = pneg %p196
      // Predicated region
      $region9: #{tpu_custom_call.1} parent=5 // pred_check
        _
      $region10: #{tpu_custom_call.1} parent=5 // pred_check_branch
        %199 = sbr.rel (%p196) target = $region12
      $region11: #{tpu_custom_call.1} parent=5 // pred_region
        %s200 = ssub.s32 %s18, 1
      $region12: #{tpu_custom_call.1} parent=5 // pred_fallthru
        _
      %p201 = scmp.lt.s32.totalorder %s18, 8
      // Predicated region
      $region13: #{tpu_custom_call.1} parent=5 // pred_check
        %p202 = pneg %p201
      $region14: #{tpu_custom_call.1} parent=5 // pred_check_branch
        %204 = sbr.rel (%p202) target = $region16
      $region15: #{tpu_custom_call.1} parent=5 // pred_region
        // Predicated region
        $region17: #{tpu_custom_call.1} parent=15 // pred_check
          %p205 = pneg %p50
        $region18: #{tpu_custom_call.1} parent=15 // pred_check_branch
          %207 = sbr.rel (%p205) target = $region20
        $region19: #{tpu_custom_call.1} parent=15 // pred_region
          %s208 = smul.u32 2, %s25
          %p209 = scmp.lt.s32.totalorder %s208, 7
          %s210 = scalar_select %p209, %s208, 7
          %s211 = smul.addr %s210, 4
          %s212 = scalar_lea.vmem %s0, %s211
          %s213 = smul.u32 2, %s25
        $region20: #{tpu_custom_call.1} parent=15 // pred_fallthru
          _
        // Predicated region
        $region21: #{tpu_custom_call.1} parent=15 // pred_check
          %p214 = pneg %p76
        $region22: #{tpu_custom_call.1} parent=15 // pred_check_branch
          %216 = sbr.rel (%p214) target = $region24
        $region23: #{tpu_custom_call.1} parent=15 // pred_region
          %s217 = smul.u32 4, %s26
          %p218 = scmp.lt.s32.totalorder %s217, 7
          %s219 = scalar_select %p218, %s217, 7
          %s220 = smul.addr %s219, 4
          %s221 = scalar_lea.vmem %s1, %s220
          %s222 = smul.u32 4, %s26
        $region24: #{tpu_custom_call.1} parent=15 // pred_fallthru
          _
        // Predicated region
        $region25: #{tpu_custom_call.1} parent=15 // pred_check
          %p223 = pneg %p102
        $region26: #{tpu_custom_call.1} parent=15 // pred_check_branch
          %225 = sbr.rel (%p223) target = $region28
        $region27: #{tpu_custom_call.1} parent=15 // pred_region
          %s226 = smul.u32 32, %s25
          %p227 = scmp.lt.s32.totalorder %s226, 127
          %s228 = scalar_select %p227, %s226, 127
          %s229 = smul.addr %s228, 8
          %s230 = scalar_lea.vmem %s2, %s229
          %s231 = smul.u32 32, %s25
        $region28: #{tpu_custom_call.1} parent=15 // pred_fallthru
          _
        // Predicated region
        $region29: #{tpu_custom_call.1} parent=15 // pred_check
          %p232 = pneg %p128
        $region30: #{tpu_custom_call.1} parent=15 // pred_check_branch
          %234 = sbr.rel (%p232) target = $region32
        $region31: #{tpu_custom_call.1} parent=15 // pred_region
          %s235 = smul.u32 4, %s26
          %p236 = scmp.lt.s32.totalorder %s235, 7
          %s237 = scalar_select %p236, %s235, 7
          %s238 = scalar_lea.vmem %s3, %s237
          %s239 = smul.u32 4, %s26
        $region32: #{tpu_custom_call.1} parent=15 // pred_fallthru
          _
      $region16: #{tpu_custom_call.1} parent=5 // pred_fallthru
        _
      %p240 = scmp.le.s32.totalorder 1, %s18
      %p241 = scmp.lt.s32.totalorder %s18, 9
      %p242 = pnand %p240, %p241
      %p243 = pneg %p242
      // Predicated region
      $region33: #{tpu_custom_call.1} parent=5 // pred_check
        _
      $region34: #{tpu_custom_call.1} parent=5 // pred_check_branch
        %245 = sbr.rel (%p242) target = $region36
      $region35: #{tpu_custom_call.1} parent=5 // pred_region
        %s246 = ssub.s32 %s18, 1
        %s247 = smul.u32 2, %s27
        %p248 = scmp.lt.s32.totalorder %s247, 7
        %s249 = scalar_select %p248, %s247, 7
        %s250 = smul.addr %s249, 4
        %s251 = scalar_lea.vmem %s0, %s250
        %p252 = pneg %p56
        %p253 = pneg %p53
        %s254 = smul.u32 4, %s28
        %p255 = scmp.lt.s32.totalorder %s254, 7
        %s256 = scalar_select %p255, %s254, 7
        %s257 = smul.addr %s256, 4
        %s258 = scalar_lea.vmem %s1, %s257
        %p259 = pneg %p82
        %p260 = pneg %p79
        %s261 = smul.u32 32, %s27
        %p262 = scmp.lt.s32.totalorder %s261, 127
        %s263 = scalar_select %p262, %s261, 127
        %s264 = smul.addr %s263, 8
        %s265 = scalar_lea.vmem %s2, %s264
        %p266 = pneg %p108
        %p267 = pneg %p105
        %s268 = smul.u32 4, %s28
        %p269 = scmp.lt.s32.totalorder %s268, 7
        %s270 = scalar_select %p269, %s268, 7
        %s271 = scalar_lea.vmem %s3, %s270
        %p272 = pneg %p134
        %p273 = pneg %p131
        %p274 = pneg %p160
        %p275 = pneg %p157
        %s276 = sand.u32 %s147, 1
        %s277 = scalar_lea.sflag [#allocation5], %s276
        %s278 = sand.u32 %s147, 1
        %s279 = scalar_lea.vmem [#allocation4], %s278
        %p280 = pneg %p186
        %p281 = pneg %p183
        %s282 = sand.u32 %s173, 1
        %s283 = scalar_lea.sflag [#allocation7], %s282
        %s284 = sand.u32 %s173, 1
        %s285 = scalar_lea.vmem [#allocation6], %s284
        %s286 = smul.u32 2, %s27
        %p287 = scmp.lt.s32.totalorder %s286, 7
        %s288 = scalar_select %p287, %s286, 7
        %s289 = smul.addr %s288, 4
        %s290 = scalar_lea.vmem %s0, %s289
        %s291 = smul.u32 2, %s27
        %s292 = smul.u32 4, %s28
        %p293 = scmp.lt.s32.totalorder %s292, 7
        %s294 = scalar_select %p293, %s292, 7
        %s295 = smul.addr %s294, 4
        %s296 = scalar_lea.vmem %s1, %s295
        %s297 = smul.u32 4, %s28
        %s298 = smul.u32 32, %s27
        %p299 = scmp.lt.s32.totalorder %s298, 127
        %s300 = scalar_select %p299, %s298, 127
        %s301 = smul.addr %s300, 8
        %s302 = scalar_lea.vmem %s2, %s301
        %s303 = smul.u32 32, %s27
        %s304 = smul.u32 4, %s28
        %p305 = scmp.lt.s32.totalorder %s304, 7
        %s306 = scalar_select %p305, %s304, 7
        %s307 = scalar_lea.vmem %s3, %s306
        %s308 = smul.u32 4, %s28
        %p309 = scmp.eq.s32.totalorder %s28, 0
        // Predicated region
        $region37: #{tpu_custom_call.1} parent=35 // pred_check
          %p310 = pneg %p309
        $region38: #{tpu_custom_call.1} parent=35 // pred_check_branch
          %312 = sbr.rel (%p310) target = $region40
        $region39: #{tpu_custom_call.1} parent=35 // pred_region
          %v313 = vlaneseq
          %vm314 = vcmp.ge.s32.totalorder %v313, 0
          %vm315 = vcmp.lt.s32.totalorder %v313, 512
          %vm316 = vmand %vm314, %vm315
          %317 = vst.msk [vmem:[#allocation2] sm:$0xf] %vm316, 0.0
          %318 = vst.msk [vmem:[#allocation3] sm:$0xf] %vm316, 0.0
        $region40: #{tpu_custom_call.1} parent=35 // pred_fallthru
          _
        %v319 = vld [vmem:[%s290] sm:$0xff]
        %v320 = vld [vmem:[%s296] sm:$0xff]
        %v321 = vld [vmem:[%s296 + $0x8] sm:$0xff]
        %v323 = vcombine.high %v319, %v319
        %325 = vxpose.xlu0.b32.start [1/16] %v319, 128
        %326 = vxpose.xlu0.b32.cont [2/16] 0.0, 128
        %327 = vxpose.xlu0.b32.cont [3/16] 0.0, 128
        %328 = vxpose.xlu0.b32.cont [4/16] 0.0, 128
        %329 = vxpose.xlu0.b32.cont [5/16] 0.0, 128
        %330 = vxpose.xlu0.b32.cont [6/16] 0.0, 128
        %331 = vxpose.xlu0.b32.cont [7/16] 0.0, 128
        %332 = vxpose.xlu0.b32.cont [8/16] 0.0, 128
        %333 = vxpose.xlu0.b32.cont [9/16] 0.0, 128
        %334 = vxpose.xlu0.b32.cont [10/16] 0.0, 128
        %335 = vxpose.xlu0.b32.cont [11/16] 0.0, 128
        %336 = vxpose.xlu0.b32.cont [12/16] 0.0, 128
        %337 = vxpose.xlu0.b32.cont [13/16] 0.0, 128
        %338 = vxpose.xlu0.b32.cont [14/16] 0.0, 128
        %339 = vxpose.xlu0.b32.cont [15/16] 0.0, 128
        %340 = vxpose.xlu0.b32.end [16/16] 0.0, 128
        %v341 = vpop.trf.xlu0
        %v342 = vpop.trf.xlu0
        %v343 = vpop.trf.xlu0
        %v344 = vpop.trf.xlu0
        %v345 = vpop.trf.xlu0
        %v346 = vpop.trf.xlu0
        %v347 = vpop.trf.xlu0
        %v348 = vpop.trf.xlu0
        %v349 = vpop.trf.xlu0
        %v350 = vpop.trf.xlu0
        %v351 = vpop.trf.xlu0
        %v352 = vpop.trf.xlu0
        %v353 = vpop.trf.xlu0
        %v354 = vpop.trf.xlu0
        %v355 = vpop.trf.xlu0
        %v356 = vpop.trf.xlu0
        %357 = vxpose.xlu0.b32.start [1/16] %v323, 128
        %358 = vxpose.xlu0.b32.cont [2/16] 0.0, 128
        %359 = vxpose.xlu0.b32.cont [3/16] 0.0, 128
        %360 = vxpose.xlu0.b32.cont [4/16] 0.0, 128
        %361 = vxpose.xlu0.b32.cont [5/16] 0.0, 128
        %362 = vxpose.xlu0.b32.cont [6/16] 0.0, 128
        %363 = vxpose.xlu0.b32.cont [7/16] 0.0, 128
        %364 = vxpose.xlu0.b32.cont [8/16] 0.0, 128
        %365 = vxpose.xlu0.b32.cont [9/16] 0.0, 128
        %366 = vxpose.xlu0.b32.cont [10/16] 0.0, 128
        %367 = vxpose.xlu0.b32.cont [11/16] 0.0, 128
        %368 = vxpose.xlu0.b32.cont [12/16] 0.0, 128
        %369 = vxpose.xlu0.b32.cont [13/16] 0.0, 128
        %370 = vxpose.xlu0.b32.cont [14/16] 0.0, 128
        %371 = vxpose.xlu0.b32.cont [15/16] 0.0, 128
        %372 = vxpose.xlu0.b32.end [16/16] 0.0, 128
        %v373 = vpop.trf.xlu0
        %v374 = vpop.trf.xlu0
        %v375 = vpop.trf.xlu0
        %v376 = vpop.trf.xlu0
        %v377 = vpop.trf.xlu0
        %v378 = vpop.trf.xlu0
        %v379 = vpop.trf.xlu0
        %v380 = vpop.trf.xlu0
        %v381 = vpop.trf.xlu0
        %v382 = vpop.trf.xlu0
        %v383 = vpop.trf.xlu0
        %v384 = vpop.trf.xlu0
        %v385 = vpop.trf.xlu0
        %v386 = vpop.trf.xlu0
        %v387 = vpop.trf.xlu0
        %v388 = vpop.trf.xlu0
        %v391 = vcombine.high %v320, %v320
        %v392 = vcombine.high %v321, %v321
        %vm393 = vcmask 31744
        %v395 = vsel %vm393, %v341, 0
        %v398 = vsel %vm393, %v342, 0
        %v401 = vsel %vm393, %v343, 0
        %v404 = vsel %vm393, %v344, 0
        %v407 = vsel %vm393, %v345, 0
        %v410 = vsel %vm393, %v346, 0
        %v413 = vsel %vm393, %v347, 0
        %v416 = vsel %vm393, %v348, 0
        %v419 = vsel %vm393, %v349, 0
        %v422 = vsel %vm393, %v350, 0
        %v425 = vsel %vm393, %v351, 0
        %v428 = vsel %vm393, %v352, 0
        %v431 = vsel %vm393, %v353, 0
        %v434 = vsel %vm393, %v354, 0
        %v437 = vsel %vm393, %v355, 0
        %v440 = vsel %vm393, %v356, 0
        %v443 = vsel %vm393, %v373, 0
        %v446 = vsel %vm393, %v374, 0
        %v449 = vsel %vm393, %v375, 0
        %v452 = vsel %vm393, %v376, 0
        %v455 = vsel %vm393, %v377, 0
        %v458 = vsel %vm393, %v378, 0
        %v461 = vsel %vm393, %v379, 0
        %v464 = vsel %vm393, %v380, 0
        %v467 = vsel %vm393, %v381, 0
        %v470 = vsel %vm393, %v382, 0
        %v473 = vsel %vm393, %v383, 0
        %v476 = vsel %vm393, %v384, 0
        %v479 = vsel %vm393, %v385, 0
        %v482 = vsel %vm393, %v386, 0
        %v485 = vsel %vm393, %v387, 0
        %v488 = vsel %vm393, %v388, 0
        %vm490 = vcmask 1043456
        %v491 = vsel %vm490, %v320, 0
        %v493 = vsel %vm490, %v391, 0
        %v495 = vsel %vm490, %v321, 0
        %v497 = vsel %vm490, %v392, 0
        %499 = vmatprep.subr.mxu0 0.0
        %500 = vmatpush1.msra.mxu0 0.0
        %501 = vmatprep.subr.mxu0 0.0
        %502 = vmatpush1.msra.mxu0 0.0
        %503 = vmatprep.subr.mxu0 0.0
        %504 = vmatpush1.msra.mxu0 0.0
        %505 = vmatprep.subr.mxu0 0.0
        %506 = vmatpush1.msra.mxu0 0.0
        %507 = vmatprep.subr.mxu0 0.0
        %508 = vmatpush1.msra.mxu0 0.0
        %509 = vmatprep.subr.mxu0 0.0
        %510 = vmatpush1.msra.mxu0 0.0
        %511 = vmatprep.subr.mxu0 0.0
        %512 = vmatpush1.msra.mxu0 0.0
        %513 = vmatprep.subr.mxu0 0.0
        %514 = vmatpush1.msra.mxu0 0.0
        %515 = vmatprep.subr.mxu0 0.0
        %516 = vmatpush1.msra.mxu0 0.0
        %517 = vmatprep.subr.mxu0 0.0
        %518 = vmatpush1.msra.mxu0 0.0
        %519 = vmatprep.subr.mxu0 0.0
        %520 = vmatpush1.msra.mxu0 0.0
        %521 = vmatprep.subr.mxu0 0.0
        %522 = vmatpush1.msra.mxu0 0.0
        %523 = vmatprep.subr.mxu0 0.0
        %524 = vmatpush1.msra.mxu0 0.0
        %525 = vmatprep.subr.mxu0 0.0
        %526 = vmatpush1.msra.mxu0 0.0
        %527 = vmatprep.subr.mxu0 0.0
        %528 = vmatpush1.msra.mxu0 0.0
        %529 = vmatprep.subr.mxu0 %v493
        %530 = vmatpush1.msra.mxu0 %v491
        %531 = vmatprep.subr.mxu0 0.0
        %532 = vmatpush2.msra.mxu0 0.0
        %533 = vmatprep.subr.mxu0 0.0
        %534 = vmatpush2.msra.mxu0 0.0
        %535 = vmatprep.subr.mxu0 0.0
        %536 = vmatpush2.msra.mxu0 0.0
        %537 = vmatprep.subr.mxu0 0.0
        %538 = vmatpush2.msra.mxu0 0.0
        %539 = vmatprep.subr.mxu0 0.0
        %540 = vmatpush2.msra.mxu0 0.0
        %541 = vmatprep.subr.mxu0 0.0
        %542 = vmatpush2.msra.mxu0 0.0
        %543 = vmatprep.subr.mxu0 0.0
        %544 = vmatpush2.msra.mxu0 0.0
        %545 = vmatprep.subr.mxu0 0.0
        %546 = vmatpush2.msra.mxu0 0.0
        %547 = vmatprep.subr.mxu0 0.0
        %548 = vmatpush2.msra.mxu0 0.0
        %549 = vmatprep.subr.mxu0 0.0
        %550 = vmatpush2.msra.mxu0 0.0
        %551 = vmatprep.subr.mxu0 0.0
        %552 = vmatpush2.msra.mxu0 0.0
        %553 = vmatprep.subr.mxu0 0.0
        %554 = vmatpush2.msra.mxu0 0.0
        %555 = vmatprep.subr.mxu0 0.0
        %556 = vmatpush2.msra.mxu0 0.0
        %557 = vmatprep.subr.mxu0 0.0
        %558 = vmatpush2.msra.mxu0 0.0
        %559 = vmatprep.subr.mxu0 0.0
        %560 = vmatpush2.msra.mxu0 0.0
        %561 = vmatprep.subr.mxu0 0.0
        %562 = vmatpush2.msra.mxu0 0.0
        %563 = vmatprep.mubr.f32.mxu0 0.0
        %564 = vmatmul.mubr.f32.gmra.mxu0 %v395
        %v565 = vpop.f32.mrf.mxu0
        %v566 = vadd.f32 0.0, %v565
        %v567 = vpop.f32.mrf.mxu0
        %v568 = vadd.f32 0.0, %v567
        %569 = vmatprep.mubr.f32.mxu0 0.0
        %570 = vmatmul.mubr.f32.gmra.mxu0 %v398
        %v571 = vpop.f32.mrf.mxu0
        %v572 = vadd.f32 0.0, %v571
        %v573 = vpop.f32.mrf.mxu0
        %v574 = vadd.f32 0.0, %v573
        %575 = vmatprep.mubr.f32.mxu0 0.0
        %576 = vmatmul.mubr.f32.gmra.mxu0 %v401
        %v577 = vpop.f32.mrf.mxu0
        %v578 = vadd.f32 0.0, %v577
        %v579 = vpop.f32.mrf.mxu0
        %v580 = vadd.f32 0.0, %v579
        %581 = vmatprep.mubr.f32.mxu0 0.0
        %582 = vmatmul.mubr.f32.gmra.mxu0 %v404
        %v583 = vpop.f32.mrf.mxu0
        %v584 = vadd.f32 0.0, %v583
        %v585 = vpop.f32.mrf.mxu0
        %v586 = vadd.f32 0.0, %v585
        %587 = vmatprep.mubr.f32.mxu0 0.0
        %588 = vmatmul.mubr.f32.gmra.mxu0 %v407
        %v589 = vpop.f32.mrf.mxu0
        %v590 = vadd.f32 0.0, %v589
        %v591 = vpop.f32.mrf.mxu0
        %v592 = vadd.f32 0.0, %v591
        %593 = vmatprep.mubr.f32.mxu0 0.0
        %594 = vmatmul.mubr.f32.gmra.mxu0 %v410
        %v595 = vpop.f32.mrf.mxu0
        %v596 = vadd.f32 0.0, %v595
        %v597 = vpop.f32.mrf.mxu0
        %v598 = vadd.f32 0.0, %v597
        %599 = vmatprep.mubr.f32.mxu0 0.0
        %600 = vmatmul.mubr.f32.gmra.mxu0 %v413
        %v601 = vpop.f32.mrf.mxu0
        %v602 = vadd.f32 0.0, %v601
        %v603 = vpop.f32.mrf.mxu0
        %v604 = vadd.f32 0.0, %v603
        %605 = vmatprep.mubr.f32.mxu0 0.0
        %606 = vmatmul.mubr.f32.gmra.mxu0 %v416
        %v607 = vpop.f32.mrf.mxu0
        %v608 = vadd.f32 0.0, %v607
        %v609 = vpop.f32.mrf.mxu0
        %v610 = vadd.f32 0.0, %v609
        %611 = vmatprep.mubr.f32.mxu0 0.0
        %612 = vmatmul.mubr.f32.gmra.mxu0 %v419
        %v613 = vpop.f32.mrf.mxu0
        %v614 = vadd.f32 0.0, %v613
        %v615 = vpop.f32.mrf.mxu0
        %v616 = vadd.f32 0.0, %v615
        %617 = vmatprep.mubr.f32.mxu0 0.0
        %618 = vmatmul.mubr.f32.gmra.mxu0 %v422
        %v619 = vpop.f32.mrf.mxu0
        %v620 = vadd.f32 0.0, %v619
        %v621 = vpop.f32.mrf.mxu0
        %v622 = vadd.f32 0.0, %v621
        %623 = vmatprep.mubr.f32.mxu0 0.0
        %624 = vmatmul.mubr.f32.gmra.mxu0 %v425
        %v625 = vpop.f32.mrf.mxu0
        %v626 = vadd.f32 0.0, %v625
        %v627 = vpop.f32.mrf.mxu0
        %v628 = vadd.f32 0.0, %v627
        %629 = vmatprep.mubr.f32.mxu0 0.0
        %630 = vmatmul.mubr.f32.gmra.mxu0 %v428
        %v631 = vpop.f32.mrf.mxu0
        %v632 = vadd.f32 0.0, %v631
        %v633 = vpop.f32.mrf.mxu0
        %v634 = vadd.f32 0.0, %v633
        %635 = vmatprep.mubr.f32.mxu0 0.0
        %636 = vmatmul.mubr.f32.gmra.mxu0 %v431
        %v637 = vpop.f32.mrf.mxu0
        %v638 = vadd.f32 0.0, %v637
        %v639 = vpop.f32.mrf.mxu0
        %v640 = vadd.f32 0.0, %v639
        %641 = vmatprep.mubr.f32.mxu0 0.0
        %642 = vmatmul.mubr.f32.gmra.mxu0 %v434
        %v643 = vpop.f32.mrf.mxu0
        %v644 = vadd.f32 0.0, %v643
        %v645 = vpop.f32.mrf.mxu0
        %v646 = vadd.f32 0.0, %v645
        %647 = vmatprep.mubr.f32.mxu0 0.0
        %648 = vmatmul.mubr.f32.gmra.mxu0 %v437
        %v649 = vpop.f32.mrf.mxu0
        %v650 = vadd.f32 0.0, %v649
        %v651 = vpop.f32.mrf.mxu0
        %v652 = vadd.f32 0.0, %v651
        %653 = vmatprep.mubr.f32.mxu0 0.0
        %654 = vmatmul.mubr.f32.gmra.mxu0 %v440
        %v655 = vpop.f32.mrf.mxu0
        %v656 = vadd.f32 0.0, %v655
        %v657 = vpop.f32.mrf.mxu0
        %v658 = vadd.f32 0.0, %v657
        %659 = vmatprep.mubr.f32.mxu0 0.0
        %660 = vmatmul.mubr.f32.gmra.mxu0 %v443
        %v661 = vpop.f32.mrf.mxu0
        %v662 = vadd.f32 0.0, %v661
        %v663 = vpop.f32.mrf.mxu0
        %v664 = vadd.f32 0.0, %v663
        %665 = vmatprep.mubr.f32.mxu0 0.0
        %666 = vmatmul.mubr.f32.gmra.mxu0 %v446
        %v667 = vpop.f32.mrf.mxu0
        %v668 = vadd.f32 0.0, %v667
        %v669 = vpop.f32.mrf.mxu0
        %v670 = vadd.f32 0.0, %v669
        %671 = vmatprep.mubr.f32.mxu0 0.0
        %672 = vmatmul.mubr.f32.gmra.mxu0 %v449
        %v673 = vpop.f32.mrf.mxu0
        %v674 = vadd.f32 0.0, %v673
        %v675 = vpop.f32.mrf.mxu0
        %v676 = vadd.f32 0.0, %v675
        %677 = vmatprep.mubr.f32.mxu0 0.0
        %678 = vmatmul.mubr.f32.gmra.mxu0 %v452
        %v679 = vpop.f32.mrf.mxu0
        %v680 = vadd.f32 0.0, %v679
        %v681 = vpop.f32.mrf.mxu0
        %v682 = vadd.f32 0.0, %v681
        %683 = vmatprep.mubr.f32.mxu0 0.0
        %684 = vmatmul.mubr.f32.gmra.mxu0 %v455
        %v685 = vpop.f32.mrf.mxu0
        %v686 = vadd.f32 0.0, %v685
        %v687 = vpop.f32.mrf.mxu0
        %v688 = vadd.f32 0.0, %v687
        %689 = vmatprep.mubr.f32.mxu0 0.0
        %690 = vmatmul.mubr.f32.gmra.mxu0 %v458
        %v691 = vpop.f32.mrf.mxu0
        %v692 = vadd.f32 0.0, %v691
        %v693 = vpop.f32.mrf.mxu0
        %v694 = vadd.f32 0.0, %v693
        %695 = vmatprep.mubr.f32.mxu0 0.0
        %696 = vmatmul.mubr.f32.gmra.mxu0 %v461
        %v697 = vpop.f32.mrf.mxu0
        %v698 = vadd.f32 0.0, %v697
        %v699 = vpop.f32.mrf.mxu0
        %v700 = vadd.f32 0.0, %v699
        %701 = vmatprep.mubr.f32.mxu0 0.0
        %702 = vmatmul.mubr.f32.gmra.mxu0 %v464
        %v703 = vpop.f32.mrf.mxu0
        %v704 = vadd.f32 0.0, %v703
        %v705 = vpop.f32.mrf.mxu0
        %v706 = vadd.f32 0.0, %v705
        %707 = vmatprep.mubr.f32.mxu0 0.0
        %708 = vmatmul.mubr.f32.gmra.mxu0 %v467
        %v709 = vpop.f32.mrf.mxu0
        %v710 = vadd.f32 0.0, %v709
        %v711 = vpop.f32.mrf.mxu0
        %v712 = vadd.f32 0.0, %v711
        %713 = vmatprep.mubr.f32.mxu0 0.0
        %714 = vmatmul.mubr.f32.gmra.mxu0 %v470
        %v715 = vpop.f32.mrf.mxu0
        %v716 = vadd.f32 0.0, %v715
        %v717 = vpop.f32.mrf.mxu0
        %v718 = vadd.f32 0.0, %v717
        %719 = vmatprep.mubr.f32.mxu0 0.0
        %720 = vmatmul.mubr.f32.gmra.mxu0 %v473
        %v721 = vpop.f32.mrf.mxu0
        %v722 = vadd.f32 0.0, %v721
        %v723 = vpop.f32.mrf.mxu0
        %v724 = vadd.f32 0.0, %v723
        %725 = vmatprep.mubr.f32.mxu0 0.0
        %726 = vmatmul.mubr.f32.gmra.mxu0 %v476
        %v727 = vpop.f32.mrf.mxu0
        %v728 = vadd.f32 0.0, %v727
        %v729 = vpop.f32.mrf.mxu0
        %v730 = vadd.f32 0.0, %v729
        %731 = vmatprep.mubr.f32.mxu0 0.0
        %732 = vmatmul.mubr.f32.gmra.mxu0 %v479
        %v733 = vpop.f32.mrf.mxu0
        %v734 = vadd.f32 0.0, %v733
        %v735 = vpop.f32.mrf.mxu0
        %v736 = vadd.f32 0.0, %v735
        %737 = vmatprep.mubr.f32.mxu0 0.0
        %738 = vmatmul.mubr.f32.gmra.mxu0 %v482
        %v739 = vpop.f32.mrf.mxu0
        %v740 = vadd.f32 0.0, %v739
        %v741 = vpop.f32.mrf.mxu0
        %v742 = vadd.f32 0.0, %v741
        %743 = vmatprep.mubr.f32.mxu0 0.0
        %744 = vmatmul.mubr.f32.gmra.mxu0 %v485
        %v745 = vpop.f32.mrf.mxu0
        %v746 = vadd.f32 0.0, %v745
        %v747 = vpop.f32.mrf.mxu0
        %v748 = vadd.f32 0.0, %v747
        %749 = vmatprep.mubr.f32.mxu0 0.0
        %750 = vmatmul.mubr.f32.gmra.mxu0 %v488
        %v751 = vpop.f32.mrf.mxu0
        %v752 = vadd.f32 0.0, %v751
        %v753 = vpop.f32.mrf.mxu0
        %v754 = vadd.f32 0.0, %v753
        %755 = vdwg.mxu0
        %756 = vmatprep.subr.mxu0 0.0
        %757 = vmatpush1.msra.mxu0 0.0
        %758 = vmatprep.subr.mxu0 0.0
        %759 = vmatpush1.msra.mxu0 0.0
        %760 = vmatprep.subr.mxu0 0.0
        %761 = vmatpush1.msra.mxu0 0.0
        %762 = vmatprep.subr.mxu0 0.0
        %763 = vmatpush1.msra.mxu0 0.0
        %764 = vmatprep.subr.mxu0 0.0
        %765 = vmatpush1.msra.mxu0 0.0
        %766 = vmatprep.subr.mxu0 0.0
        %767 = vmatpush1.msra.mxu0 0.0
        %768 = vmatprep.subr.mxu0 0.0
        %769 = vmatpush1.msra.mxu0 0.0
        %770 = vmatprep.subr.mxu0 0.0
        %771 = vmatpush1.msra.mxu0 0.0
        %772 = vmatprep.subr.mxu0 0.0
        %773 = vmatpush1.msra.mxu0 0.0
        %774 = vmatprep.subr.mxu0 0.0
        %775 = vmatpush1.msra.mxu0 0.0
        %776 = vmatprep.subr.mxu0 0.0
        %777 = vmatpush1.msra.mxu0 0.0
        %778 = vmatprep.subr.mxu0 0.0
        %779 = vmatpush1.msra.mxu0 0.0
        %780 = vmatprep.subr.mxu0 0.0
        %781 = vmatpush1.msra.mxu0 0.0
        %782 = vmatprep.subr.mxu0 0.0
        %783 = vmatpush1.msra.mxu0 0.0
        %784 = vmatprep.subr.mxu0 0.0
        %785 = vmatpush1.msra.mxu0 0.0
        %786 = vmatprep.subr.mxu0 %v497
        %787 = vmatpush1.msra.mxu0 %v495
        %788 = vmatprep.subr.mxu0 0.0
        %789 = vmatpush2.msra.mxu0 0.0
        %790 = vmatprep.subr.mxu0 0.0
        %791 = vmatpush2.msra.mxu0 0.0
        %792 = vmatprep.subr.mxu0 0.0
        %793 = vmatpush2.msra.mxu0 0.0
        %794 = vmatprep.subr.mxu0 0.0
        %795 = vmatpush2.msra.mxu0 0.0
        %796 = vmatprep.subr.mxu0 0.0
        %797 = vmatpush2.msra.mxu0 0.0
        %798 = vmatprep.subr.mxu0 0.0
        %799 = vmatpush2.msra.mxu0 0.0
        %800 = vmatprep.subr.mxu0 0.0
        %801 = vmatpush2.msra.mxu0 0.0
        %802 = vmatprep.subr.mxu0 0.0
        %803 = vmatpush2.msra.mxu0 0.0
        %804 = vmatprep.subr.mxu0 0.0
        %805 = vmatpush2.msra.mxu0 0.0
        %806 = vmatprep.subr.mxu0 0.0
        %807 = vmatpush2.msra.mxu0 0.0
        %808 = vmatprep.subr.mxu0 0.0
        %809 = vmatpush2.msra.mxu0 0.0
        %810 = vmatprep.subr.mxu0 0.0
        %811 = vmatpush2.msra.mxu0 0.0
        %812 = vmatprep.subr.mxu0 0.0
        %813 = vmatpush2.msra.mxu0 0.0
        %814 = vmatprep.subr.mxu0 0.0
        %815 = vmatpush2.msra.mxu0 0.0
        %816 = vmatprep.subr.mxu0 0.0
        %817 = vmatpush2.msra.mxu0 0.0
        %818 = vmatprep.subr.mxu0 0.0
        %819 = vmatpush2.msra.mxu0 0.0
        %820 = vmatprep.mubr.f32.mxu0 0.0
        %821 = vmatmul.mubr.f32.gmra.mxu0 %v395
        %v822 = vpop.f32.mrf.mxu0
        %v823 = vadd.f32 0.0, %v822
        %v824 = vpop.f32.mrf.mxu0
        %v825 = vadd.f32 0.0, %v824
        %826 = vmatprep.mubr.f32.mxu0 0.0
        %827 = vmatmul.mubr.f32.gmra.mxu0 %v398
        %v828 = vpop.f32.mrf.mxu0
        %v829 = vadd.f32 0.0, %v828
        %v830 = vpop.f32.mrf.mxu0
        %v831 = vadd.f32 0.0, %v830
        %832 = vmatprep.mubr.f32.mxu0 0.0
        %833 = vmatmul.mubr.f32.gmra.mxu0 %v401
        %v834 = vpop.f32.mrf.mxu0
        %v835 = vadd.f32 0.0, %v834
        %v836 = vpop.f32.mrf.mxu0
        %v837 = vadd.f32 0.0, %v836
        %838 = vmatprep.mubr.f32.mxu0 0.0
        %839 = vmatmul.mubr.f32.gmra.mxu0 %v404
        %v840 = vpop.f32.mrf.mxu0
        %v841 = vadd.f32 0.0, %v840
        %v842 = vpop.f32.mrf.mxu0
        %v843 = vadd.f32 0.0, %v842
        %844 = vmatprep.mubr.f32.mxu0 0.0
        %845 = vmatmul.mubr.f32.gmra.mxu0 %v407
        %v846 = vpop.f32.mrf.mxu0
        %v847 = vadd.f32 0.0, %v846
        %v848 = vpop.f32.mrf.mxu0
        %v849 = vadd.f32 0.0, %v848
        %850 = vmatprep.mubr.f32.mxu0 0.0
        %851 = vmatmul.mubr.f32.gmra.mxu0 %v410
        %v852 = vpop.f32.mrf.mxu0
        %v853 = vadd.f32 0.0, %v852
        %v854 = vpop.f32.mrf.mxu0
        %v855 = vadd.f32 0.0, %v854
        %856 = vmatprep.mubr.f32.mxu0 0.0
        %857 = vmatmul.mubr.f32.gmra.mxu0 %v413
        %v858 = vpop.f32.mrf.mxu0
        %v859 = vadd.f32 0.0, %v858
        %v860 = vpop.f32.mrf.mxu0
        %v861 = vadd.f32 0.0, %v860
        %862 = vmatprep.mubr.f32.mxu0 0.0
        %863 = vmatmul.mubr.f32.gmra.mxu0 %v416
        %v864 = vpop.f32.mrf.mxu0
        %v865 = vadd.f32 0.0, %v864
        %v866 = vpop.f32.mrf.mxu0
        %v867 = vadd.f32 0.0, %v866
        %868 = vmatprep.mubr.f32.mxu0 0.0
        %869 = vmatmul.mubr.f32.gmra.mxu0 %v419
        %v870 = vpop.f32.mrf.mxu0
        %v871 = vadd.f32 0.0, %v870
        %v872 = vpop.f32.mrf.mxu0
        %v873 = vadd.f32 0.0, %v872
        %874 = vmatprep.mubr.f32.mxu0 0.0
        %875 = vmatmul.mubr.f32.gmra.mxu0 %v422
        %v876 = vpop.f32.mrf.mxu0
        %v877 = vadd.f32 0.0, %v876
        %v878 = vpop.f32.mrf.mxu0
        %v879 = vadd.f32 0.0, %v878
        %880 = vmatprep.mubr.f32.mxu0 0.0
        %881 = vmatmul.mubr.f32.gmra.mxu0 %v425
        %v882 = vpop.f32.mrf.mxu0
        %v883 = vadd.f32 0.0, %v882
        %v884 = vpop.f32.mrf.mxu0
        %v885 = vadd.f32 0.0, %v884
        %886 = vmatprep.mubr.f32.mxu0 0.0
        %887 = vmatmul.mubr.f32.gmra.mxu0 %v428
        %v888 = vpop.f32.mrf.mxu0
        %v889 = vadd.f32 0.0, %v888
        %v890 = vpop.f32.mrf.mxu0
        %v891 = vadd.f32 0.0, %v890
        %892 = vmatprep.mubr.f32.mxu0 0.0
        %893 = vmatmul.mubr.f32.gmra.mxu0 %v431
        %v894 = vpop.f32.mrf.mxu0
        %v895 = vadd.f32 0.0, %v894
        %v896 = vpop.f32.mrf.mxu0
        %v897 = vadd.f32 0.0, %v896
        %898 = vmatprep.mubr.f32.mxu0 0.0
        %899 = vmatmul.mubr.f32.gmra.mxu0 %v434
        %v900 = vpop.f32.mrf.mxu0
        %v901 = vadd.f32 0.0, %v900
        %v902 = vpop.f32.mrf.mxu0
        %v903 = vadd.f32 0.0, %v902
        %904 = vmatprep.mubr.f32.mxu0 0.0
        %905 = vmatmul.mubr.f32.gmra.mxu0 %v437
        %v906 = vpop.f32.mrf.mxu0
        %v907 = vadd.f32 0.0, %v906
        %v908 = vpop.f32.mrf.mxu0
        %v909 = vadd.f32 0.0, %v908
        %910 = vmatprep.mubr.f32.mxu0 0.0
        %911 = vmatmul.mubr.f32.gmra.mxu0 %v440
        %v912 = vpop.f32.mrf.mxu0
        %v913 = vadd.f32 0.0, %v912
        %v914 = vpop.f32.mrf.mxu0
        %v915 = vadd.f32 0.0, %v914
        %916 = vmatprep.mubr.f32.mxu0 0.0
        %917 = vmatmul.mubr.f32.gmra.mxu0 %v443
        %v918 = vpop.f32.mrf.mxu0
        %v919 = vadd.f32 0.0, %v918
        %v920 = vpop.f32.mrf.mxu0
        %v921 = vadd.f32 0.0, %v920
        %922 = vmatprep.mubr.f32.mxu0 0.0
        %923 = vmatmul.mubr.f32.gmra.mxu0 %v446
        %v924 = vpop.f32.mrf.mxu0
        %v925 = vadd.f32 0.0, %v924
        %v926 = vpop.f32.mrf.mxu0
        %v927 = vadd.f32 0.0, %v926
        %928 = vmatprep.mubr.f32.mxu0 0.0
        %929 = vmatmul.mubr.f32.gmra.mxu0 %v449
        %v930 = vpop.f32.mrf.mxu0
        %v931 = vadd.f32 0.0, %v930
        %v932 = vpop.f32.mrf.mxu0
        %v933 = vadd.f32 0.0, %v932
        %934 = vmatprep.mubr.f32.mxu0 0.0
        %935 = vmatmul.mubr.f32.gmra.mxu0 %v452
        %v936 = vpop.f32.mrf.mxu0
        %v937 = vadd.f32 0.0, %v936
        %v938 = vpop.f32.mrf.mxu0
        %v939 = vadd.f32 0.0, %v938
        %940 = vmatprep.mubr.f32.mxu0 0.0
        %941 = vmatmul.mubr.f32.gmra.mxu0 %v455
        %v942 = vpop.f32.mrf.mxu0
        %v943 = vadd.f32 0.0, %v942
        %v944 = vpop.f32.mrf.mxu0
        %v945 = vadd.f32 0.0, %v944
        %946 = vmatprep.mubr.f32.mxu0 0.0
        %947 = vmatmul.mubr.f32.gmra.mxu0 %v458
        %v948 = vpop.f32.mrf.mxu0
        %v949 = vadd.f32 0.0, %v948
        %v950 = vpop.f32.mrf.mxu0
        %v951 = vadd.f32 0.0, %v950
        %952 = vmatprep.mubr.f32.mxu0 0.0
        %953 = vmatmul.mubr.f32.gmra.mxu0 %v461
        %v954 = vpop.f32.mrf.mxu0
        %v955 = vadd.f32 0.0, %v954
        %v956 = vpop.f32.mrf.mxu0
        %v957 = vadd.f32 0.0, %v956
        %958 = vmatprep.mubr.f32.mxu0 0.0
        %959 = vmatmul.mubr.f32.gmra.mxu0 %v464
        %v960 = vpop.f32.mrf.mxu0
        %v961 = vadd.f32 0.0, %v960
        %v962 = vpop.f32.mrf.mxu0
        %v963 = vadd.f32 0.0, %v962
        %964 = vmatprep.mubr.f32.mxu0 0.0
        %965 = vmatmul.mubr.f32.gmra.mxu0 %v467
        %v966 = vpop.f32.mrf.mxu0
        %v967 = vadd.f32 0.0, %v966
        %v968 = vpop.f32.mrf.mxu0
        %v969 = vadd.f32 0.0, %v968
        %970 = vmatprep.mubr.f32.mxu0 0.0
        %971 = vmatmul.mubr.f32.gmra.mxu0 %v470
        %v972 = vpop.f32.mrf.mxu0
        %v973 = vadd.f32 0.0, %v972
        %v974 = vpop.f32.mrf.mxu0
        %v975 = vadd.f32 0.0, %v974
        %976 = vmatprep.mubr.f32.mxu0 0.0
        %977 = vmatmul.mubr.f32.gmra.mxu0 %v473
        %v978 = vpop.f32.mrf.mxu0
        %v979 = vadd.f32 0.0, %v978
        %v980 = vpop.f32.mrf.mxu0
        %v981 = vadd.f32 0.0, %v980
        %982 = vmatprep.mubr.f32.mxu0 0.0
        %983 = vmatmul.mubr.f32.gmra.mxu0 %v476
        %v984 = vpop.f32.mrf.mxu0
        %v985 = vadd.f32 0.0, %v984
        %v986 = vpop.f32.mrf.mxu0
        %v987 = vadd.f32 0.0, %v986
        %988 = vmatprep.mubr.f32.mxu0 0.0
        %989 = vmatmul.mubr.f32.gmra.mxu0 %v479
        %v990 = vpop.f32.mrf.mxu0
        %v991 = vadd.f32 0.0, %v990
        %v992 = vpop.f32.mrf.mxu0
        %v993 = vadd.f32 0.0, %v992
        %994 = vmatprep.mubr.f32.mxu0 0.0
        %995 = vmatmul.mubr.f32.gmra.mxu0 %v482
        %v996 = vpop.f32.mrf.mxu0
        %v997 = vadd.f32 0.0, %v996
        %v998 = vpop.f32.mrf.mxu0
        %v999 = vadd.f32 0.0, %v998
        %1000 = vmatprep.mubr.f32.mxu0 0.0
        %1001 = vmatmul.mubr.f32.gmra.mxu0 %v485
        %v1002 = vpop.f32.mrf.mxu0
        %v1003 = vadd.f32 0.0, %v1002
        %v1004 = vpop.f32.mrf.mxu0
        %v1005 = vadd.f32 0.0, %v1004
        %1006 = vmatprep.mubr.f32.mxu0 0.0
        %1007 = vmatmul.mubr.f32.gmra.mxu0 %v488
        %v1008 = vpop.f32.mrf.mxu0
        %v1009 = vadd.f32 0.0, %v1008
        %v1010 = vpop.f32.mrf.mxu0
        %v1011 = vadd.f32 0.0, %v1010
        %1012 = vdwg.mxu0
        %v1013 = vmul.f32 %v566, 1.442695
        %v1014 = vpow.pop %v1013
        %v1015 = vmul.f32 %v568, 1.442695
        %v1016 = vpow.pop %v1015
        %v1017 = vmul.f32 %v823, 1.442695
        %v1018 = vpow.pop %v1017
        %v1019 = vmul.f32 %v825, 1.442695
        %v1020 = vpow.pop %v1019
        %v1021 = vmul.f32 %v572, 1.442695
        %v1022 = vpow.pop %v1021
        %v1023 = vmul.f32 %v574, 1.442695
        %v1024 = vpow.pop %v1023
        %v1025 = vmul.f32 %v829, 1.442695
        %v1026 = vpow.pop %v1025
        %v1027 = vmul.f32 %v831, 1.442695
        %v1028 = vpow.pop %v1027
        %v1029 = vmul.f32 %v578, 1.442695
        %v1030 = vpow.pop %v1029
        %v1031 = vmul.f32 %v580, 1.442695
        %v1032 = vpow.pop %v1031
        %v1033 = vmul.f32 %v835, 1.442695
        %v1034 = vpow.pop %v1033
        %v1035 = vmul.f32 %v837, 1.442695
        %v1036 = vpow.pop %v1035
        %v1037 = vmul.f32 %v584, 1.442695
        %v1038 = vpow.pop %v1037
        %v1039 = vmul.f32 %v586, 1.442695
        %v1040 = vpow.pop %v1039
        %v1041 = vmul.f32 %v841, 1.442695
        %v1042 = vpow.pop %v1041
        %v1043 = vmul.f32 %v843, 1.442695
        %v1044 = vpow.pop %v1043
        %v1045 = vmul.f32 %v590, 1.442695
        %v1046 = vpow.pop %v1045
        %v1047 = vmul.f32 %v592, 1.442695
        %v1048 = vpow.pop %v1047
        %v1049 = vmul.f32 %v847, 1.442695
        %v1050 = vpow.pop %v1049
        %v1051 = vmul.f32 %v849, 1.442695
        %v1052 = vpow.pop %v1051
        %v1053 = vmul.f32 %v596, 1.442695
        %v1054 = vpow.pop %v1053
        %v1055 = vmul.f32 %v598, 1.442695
        %v1056 = vpow.pop %v1055
        %v1057 = vmul.f32 %v853, 1.442695
        %v1058 = vpow.pop %v1057
        %v1059 = vmul.f32 %v855, 1.442695
        %v1060 = vpow.pop %v1059
        %v1061 = vmul.f32 %v602, 1.442695
        %v1062 = vpow.pop %v1061
        %v1063 = vmul.f32 %v604, 1.442695
        %v1064 = vpow.pop %v1063
        %v1065 = vmul.f32 %v859, 1.442695
        %v1066 = vpow.pop %v1065
        %v1067 = vmul.f32 %v861, 1.442695
        %v1068 = vpow.pop %v1067
        %v1069 = vmul.f32 %v608, 1.442695
        %v1070 = vpow.pop %v1069
        %v1071 = vmul.f32 %v610, 1.442695
        %v1072 = vpow.pop %v1071
        %v1073 = vmul.f32 %v865, 1.442695
        %v1074 = vpow.pop %v1073
        %v1075 = vmul.f32 %v867, 1.442695
        %v1076 = vpow.pop %v1075
        %v1077 = vmul.f32 %v614, 1.442695
        %v1078 = vpow.pop %v1077
        %v1079 = vmul.f32 %v616, 1.442695
        %v1080 = vpow.pop %v1079
        %v1081 = vmul.f32 %v871, 1.442695
        %v1082 = vpow.pop %v1081
        %v1083 = vmul.f32 %v873, 1.442695
        %v1084 = vpow.pop %v1083
        %v1085 = vmul.f32 %v620, 1.442695
        %v1086 = vpow.pop %v1085
        %v1087 = vmul.f32 %v622, 1.442695
        %v1088 = vpow.pop %v1087
        %v1089 = vmul.f32 %v877, 1.442695
        %v1090 = vpow.pop %v1089
        %v1091 = vmul.f32 %v879, 1.442695
        %v1092 = vpow.pop %v1091
        %v1093 = vmul.f32 %v626, 1.442695
        %v1094 = vpow.pop %v1093
        %v1095 = vmul.f32 %v628, 1.442695
        %v1096 = vpow.pop %v1095
        %v1097 = vmul.f32 %v883, 1.442695
        %v1098 = vpow.pop %v1097
        %v1099 = vmul.f32 %v885, 1.442695
        %v1100 = vpow.pop %v1099
        %v1101 = vmul.f32 %v632, 1.442695
        %v1102 = vpow.pop %v1101
        %v1103 = vmul.f32 %v634, 1.442695
        %v1104 = vpow.pop %v1103
        %v1105 = vmul.f32 %v889, 1.442695
        %v1106 = vpow.pop %v1105
        %v1107 = vmul.f32 %v891, 1.442695
        %v1108 = vpow.pop %v1107
        %v1109 = vmul.f32 %v638, 1.442695
        %v1110 = vpow.pop %v1109
        %v1111 = vmul.f32 %v640, 1.442695
        %v1112 = vpow.pop %v1111
        %v1113 = vmul.f32 %v895, 1.442695
        %v1114 = vpow.pop %v1113
        %v1115 = vmul.f32 %v897, 1.442695
        %v1116 = vpow.pop %v1115
        %v1117 = vmul.f32 %v644, 1.442695
        %v1118 = vpow.pop %v1117
        %v1119 = vmul.f32 %v646, 1.442695
        %v1120 = vpow.pop %v1119
        %v1121 = vmul.f32 %v901, 1.442695
        %v1122 = vpow.pop %v1121
        %v1123 = vmul.f32 %v903, 1.442695
        %v1124 = vpow.pop %v1123
        %v1125 = vmul.f32 %v650, 1.442695
        %v1126 = vpow.pop %v1125
        %v1127 = vmul.f32 %v652, 1.442695
        %v1128 = vpow.pop %v1127
        %v1129 = vmul.f32 %v907, 1.442695
        %v1130 = vpow.pop %v1129
        %v1131 = vmul.f32 %v909, 1.442695
        %v1132 = vpow.pop %v1131
        %v1133 = vmul.f32 %v656, 1.442695
        %v1134 = vpow.pop %v1133
        %v1135 = vmul.f32 %v658, 1.442695
        %v1136 = vpow.pop %v1135
        %v1137 = vmul.f32 %v913, 1.442695
        %v1138 = vpow.pop %v1137
        %v1139 = vmul.f32 %v915, 1.442695
        %v1140 = vpow.pop %v1139
        %v1141 = vmul.f32 %v662, 1.442695
        %v1142 = vpow.pop %v1141
        %v1143 = vmul.f32 %v664, 1.442695
        %v1144 = vpow.pop %v1143
        %v1145 = vmul.f32 %v919, 1.442695
        %v1146 = vpow.pop %v1145
        %v1147 = vmul.f32 %v921, 1.442695
        %v1148 = vpow.pop %v1147
        %v1149 = vmul.f32 %v668, 1.442695
        %v1150 = vpow.pop %v1149
        %v1151 = vmul.f32 %v670, 1.442695
        %v1152 = vpow.pop %v1151
        %v1153 = vmul.f32 %v925, 1.442695
        %v1154 = vpow.pop %v1153
        %v1155 = vmul.f32 %v927, 1.442695
        %v1156 = vpow.pop %v1155
        %v1157 = vmul.f32 %v674, 1.442695
        %v1158 = vpow.pop %v1157
        %v1159 = vmul.f32 %v676, 1.442695
        %v1160 = vpow.pop %v1159
        %v1161 = vmul.f32 %v931, 1.442695
        %v1162 = vpow.pop %v1161
        %v1163 = vmul.f32 %v933, 1.442695
        %v1164 = vpow.pop %v1163
        %v1165 = vmul.f32 %v680, 1.442695
        %v1166 = vpow.pop %v1165
        %v1167 = vmul.f32 %v682, 1.442695
        %v1168 = vpow.pop %v1167
        %v1169 = vmul.f32 %v937, 1.442695
        %v1170 = vpow.pop %v1169
        %v1171 = vmul.f32 %v939, 1.442695
        %v1172 = vpow.pop %v1171
        %v1173 = vmul.f32 %v686, 1.442695
        %v1174 = vpow.pop %v1173
        %v1175 = vmul.f32 %v688, 1.442695
        %v1176 = vpow.pop %v1175
        %v1177 = vmul.f32 %v943, 1.442695
        %v1178 = vpow.pop %v1177
        %v1179 = vmul.f32 %v945, 1.442695
        %v1180 = vpow.pop %v1179
        %v1181 = vmul.f32 %v692, 1.442695
        %v1182 = vpow.pop %v1181
        %v1183 = vmul.f32 %v694, 1.442695
        %v1184 = vpow.pop %v1183
        %v1185 = vmul.f32 %v949, 1.442695
        %v1186 = vpow.pop %v1185
        %v1187 = vmul.f32 %v951, 1.442695
        %v1188 = vpow.pop %v1187
        %v1189 = vmul.f32 %v698, 1.442695
        %v1190 = vpow.pop %v1189
        %v1191 = vmul.f32 %v700, 1.442695
        %v1192 = vpow.pop %v1191
        %v1193 = vmul.f32 %v955, 1.442695
        %v1194 = vpow.pop %v1193
        %v1195 = vmul.f32 %v957, 1.442695
        %v1196 = vpow.pop %v1195
        %v1197 = vmul.f32 %v704, 1.442695
        %v1198 = vpow.pop %v1197
        %v1199 = vmul.f32 %v706, 1.442695
        %v1200 = vpow.pop %v1199
        %v1201 = vmul.f32 %v961, 1.442695
        %v1202 = vpow.pop %v1201
        %v1203 = vmul.f32 %v963, 1.442695
        %v1204 = vpow.pop %v1203
        %v1205 = vmul.f32 %v710, 1.442695
        %v1206 = vpow.pop %v1205
        %v1207 = vmul.f32 %v712, 1.442695
        %v1208 = vpow.pop %v1207
        %v1209 = vmul.f32 %v967, 1.442695
        %v1210 = vpow.pop %v1209
        %v1211 = vmul.f32 %v969, 1.442695
        %v1212 = vpow.pop %v1211
        %v1213 = vmul.f32 %v716, 1.442695
        %v1214 = vpow.pop %v1213
        %v1215 = vmul.f32 %v718, 1.442695
        %v1216 = vpow.pop %v1215
        %v1217 = vmul.f32 %v973, 1.442695
        %v1218 = vpow.pop %v1217
        %v1219 = vmul.f32 %v975, 1.442695
        %v1220 = vpow.pop %v1219
        %v1221 = vmul.f32 %v722, 1.442695
        %v1222 = vpow.pop %v1221
        %v1223 = vmul.f32 %v724, 1.442695
        %v1224 = vpow.pop %v1223
        %v1225 = vmul.f32 %v979, 1.442695
        %v1226 = vpow.pop %v1225
        %v1227 = vmul.f32 %v981, 1.442695
        %v1228 = vpow.pop %v1227
        %v1229 = vmul.f32 %v728, 1.442695
        %v1230 = vpow.pop %v1229
        %v1231 = vmul.f32 %v730, 1.442695
        %v1232 = vpow.pop %v1231
        %v1233 = vmul.f32 %v985, 1.442695
        %v1234 = vpow.pop %v1233
        %v1235 = vmul.f32 %v987, 1.442695
        %v1236 = vpow.pop %v1235
        %v1237 = vmul.f32 %v734, 1.442695
        %v1238 = vpow.pop %v1237
        %v1239 = vmul.f32 %v736, 1.442695
        %v1240 = vpow.pop %v1239
        %v1241 = vmul.f32 %v991, 1.442695
        %v1242 = vpow.pop %v1241
        %v1243 = vmul.f32 %v993, 1.442695
        %v1244 = vpow.pop %v1243
        %v1245 = vmul.f32 %v740, 1.442695
        %v1246 = vpow.pop %v1245
        %v1247 = vmul.f32 %v742, 1.442695
        %v1248 = vpow.pop %v1247
        %v1249 = vmul.f32 %v997, 1.442695
        %v1250 = vpow.pop %v1249
        %v1251 = vmul.f32 %v999, 1.442695
        %v1252 = vpow.pop %v1251
        %v1253 = vmul.f32 %v746, 1.442695
        %v1254 = vpow.pop %v1253
        %v1255 = vmul.f32 %v748, 1.442695
        %v1256 = vpow.pop %v1255
        %v1257 = vmul.f32 %v1003, 1.442695
        %v1258 = vpow.pop %v1257
        %v1259 = vmul.f32 %v1005, 1.442695
        %v1260 = vpow.pop %v1259
        %v1261 = vmul.f32 %v752, 1.442695
        %v1262 = vpow.pop %v1261
        %v1263 = vmul.f32 %v754, 1.442695
        %v1264 = vpow.pop %v1263
        %v1265 = vmul.f32 %v1009, 1.442695
        %v1266 = vpow.pop %v1265
        %v1267 = vmul.f32 %v1011, 1.442695
        %v1268 = vpow.pop %v1267
        %v1269 = vld [vmem:[%s302] sm:$0xff]
        %v1270 = vld [vmem:[%s302 + $0x8] sm:$0xff]
        %v1271 = vld [vmem:[%s302 + $0x10] sm:$0xff]
        %v1272 = vld [vmem:[%s302 + $0x18] sm:$0xff]
        %v1273 = vld [vmem:[%s302 + $0x20] sm:$0xff]
        %v1274 = vld [vmem:[%s302 + $0x28] sm:$0xff]
        %v1275 = vld [vmem:[%s302 + $0x30] sm:$0xff]
        %v1276 = vld [vmem:[%s302 + $0x38] sm:$0xff]
        %v1277 = vld [vmem:[%s302 + $0x40] sm:$0xff]
        %v1278 = vld [vmem:[%s302 + $0x48] sm:$0xff]
        %v1279 = vld [vmem:[%s302 + $0x50] sm:$0xff]
        %v1280 = vld [vmem:[%s302 + $0x58] sm:$0xff]
        %v1281 = vld [vmem:[%s302 + $0x60] sm:$0xff]
        %v1282 = vld [vmem:[%s302 + $0x68] sm:$0xff]
        %v1283 = vld [vmem:[%s302 + $0x70] sm:$0xff]
        %v1284 = vld [vmem:[%s302 + $0x78] sm:$0xff]
        %v1285 = vld [vmem:[%s302 + $0x80] sm:$0xff]
        %v1286 = vld [vmem:[%s302 + $0x88] sm:$0xff]
        %v1287 = vld [vmem:[%s302 + $0x90] sm:$0xff]
        %v1288 = vld [vmem:[%s302 + $0x98] sm:$0xff]
        %v1289 = vld [vmem:[%s302 + $0xa0] sm:$0xff]
        %v1290 = vld [vmem:[%s302 + $0xa8] sm:$0xff]
        %v1291 = vld [vmem:[%s302 + $0xb0] sm:$0xff]
        %v1292 = vld [vmem:[%s302 + $0xb8] sm:$0xff]
        %v1293 = vld [vmem:[%s302 + $0xc0] sm:$0xff]
        %v1294 = vld [vmem:[%s302 + $0xc8] sm:$0xff]
        %v1295 = vld [vmem:[%s302 + $0xd0] sm:$0xff]
        %v1296 = vld [vmem:[%s302 + $0xd8] sm:$0xff]
        %v1297 = vld [vmem:[%s302 + $0xe0] sm:$0xff]
        %v1298 = vld [vmem:[%s302 + $0xe8] sm:$0xff]
        %v1299 = vld [vmem:[%s302 + $0xf0] sm:$0xff]
        %v1300 = vld [vmem:[%s302 + $0xf8] sm:$0xff]
        %v1301 = vld [vmem:[%s307] sm:$0xf]
        %1303 = vset.pattern.permute.xlu0 0
        %1304 = vperm.xlu0 %1303, %v1269
        %v1305 = vpop.permute.xlu0 %1304
        %1308 = vset.pattern.permute.xlu0 0
        %1309 = vperm.xlu0 %1308, %v1270
        %v1310 = vpop.permute.xlu0 %1309
        %1313 = vset.pattern.permute.xlu0 0
        %1314 = vperm.xlu0 %1313, %v1271
        %v1315 = vpop.permute.xlu0 %1314
        %1318 = vset.pattern.permute.xlu0 0
        %1319 = vperm.xlu0 %1318, %v1272
        %v1320 = vpop.permute.xlu0 %1319
        %1323 = vset.pattern.permute.xlu0 0
        %1324 = vperm.xlu0 %1323, %v1273
        %v1325 = vpop.permute.xlu0 %1324
        %1328 = vset.pattern.permute.xlu0 0
        %1329 = vperm.xlu0 %1328, %v1274
        %v1330 = vpop.permute.xlu0 %1329
        %1333 = vset.pattern.permute.xlu0 0
        %1334 = vperm.xlu0 %1333, %v1275
        %v1335 = vpop.permute.xlu0 %1334
        %1338 = vset.pattern.permute.xlu0 0
        %1339 = vperm.xlu0 %1338, %v1276
        %v1340 = vpop.permute.xlu0 %1339
        %1343 = vset.pattern.permute.xlu0 0
        %1344 = vperm.xlu0 %1343, %v1277
        %v1345 = vpop.permute.xlu0 %1344
        %1348 = vset.pattern.permute.xlu0 0
        %1349 = vperm.xlu0 %1348, %v1278
        %v1350 = vpop.permute.xlu0 %1349
        %1353 = vset.pattern.permute.xlu0 0
        %1354 = vperm.xlu0 %1353, %v1279
        %v1355 = vpop.permute.xlu0 %1354
        %1358 = vset.pattern.permute.xlu0 0
        %1359 = vperm.xlu0 %1358, %v1280
        %v1360 = vpop.permute.xlu0 %1359
        %1363 = vset.pattern.permute.xlu0 0
        %1364 = vperm.xlu0 %1363, %v1281
        %v1365 = vpop.permute.xlu0 %1364
        %1368 = vset.pattern.permute.xlu0 0
        %1369 = vperm.xlu0 %1368, %v1282
        %v1370 = vpop.permute.xlu0 %1369
        %1373 = vset.pattern.permute.xlu0 0
        %1374 = vperm.xlu0 %1373, %v1283
        %v1375 = vpop.permute.xlu0 %1374
        %1378 = vset.pattern.permute.xlu0 0
        %1379 = vperm.xlu0 %1378, %v1284
        %v1380 = vpop.permute.xlu0 %1379
        %1383 = vset.pattern.permute.xlu0 0
        %1384 = vperm.xlu0 %1383, %v1285
        %v1385 = vpop.permute.xlu0 %1384
        %1388 = vset.pattern.permute.xlu0 0
        %1389 = vperm.xlu0 %1388, %v1286
        %v1390 = vpop.permute.xlu0 %1389
        %1393 = vset.pattern.permute.xlu0 0
        %1394 = vperm.xlu0 %1393, %v1287
        %v1395 = vpop.permute.xlu0 %1394
        %1398 = vset.pattern.permute.xlu0 0
        %1399 = vperm.xlu0 %1398, %v1288
        %v1400 = vpop.permute.xlu0 %1399
        %1403 = vset.pattern.permute.xlu0 0
        %1404 = vperm.xlu0 %1403, %v1289
        %v1405 = vpop.permute.xlu0 %1404
        %1408 = vset.pattern.permute.xlu0 0
        %1409 = vperm.xlu0 %1408, %v1290
        %v1410 = vpop.permute.xlu0 %1409
        %1413 = vset.pattern.permute.xlu0 0
        %1414 = vperm.xlu0 %1413, %v1291
        %v1415 = vpop.permute.xlu0 %1414
        %1418 = vset.pattern.permute.xlu0 0
        %1419 = vperm.xlu0 %1418, %v1292
        %v1420 = vpop.permute.xlu0 %1419
        %1423 = vset.pattern.permute.xlu0 0
        %1424 = vperm.xlu0 %1423, %v1293
        %v1425 = vpop.permute.xlu0 %1424
        %1428 = vset.pattern.permute.xlu0 0
        %1429 = vperm.xlu0 %1428, %v1294
        %v1430 = vpop.permute.xlu0 %1429
        %1433 = vset.pattern.permute.xlu0 0
        %1434 = vperm.xlu0 %1433, %v1295
        %v1435 = vpop.permute.xlu0 %1434
        %1438 = vset.pattern.permute.xlu0 0
        %1439 = vperm.xlu0 %1438, %v1296
        %v1440 = vpop.permute.xlu0 %1439
        %1443 = vset.pattern.permute.xlu0 0
        %1444 = vperm.xlu0 %1443, %v1297
        %v1445 = vpop.permute.xlu0 %1444
        %1448 = vset.pattern.permute.xlu0 0
        %1449 = vperm.xlu0 %1448, %v1298
        %v1450 = vpop.permute.xlu0 %1449
        %1453 = vset.pattern.permute.xlu0 0
        %1454 = vperm.xlu0 %1453, %v1299
        %v1455 = vpop.permute.xlu0 %1454
        %1458 = vset.pattern.permute.xlu0 0
        %1459 = vperm.xlu0 %1458, %v1300
        %v1460 = vpop.permute.xlu0 %1459
        %v1463 = vlaneseq
        %v1464 = vshrl.u32 %v1463, 7
        %v1465 = vsub.s32 0, %v1464
        %v1466 = vrot.slane %v1301, %v1465
        %v1467 = vlaneseq
        %v1468 = vshrl.u32 %v1467, 7
        %v1469 = vsub.s32 1, %v1468
        %v1470 = vrot.slane %v1301, %v1469
        %v1471 = vlaneseq
        %v1472 = vshrl.u32 %v1471, 7
        %v1473 = vsub.s32 2, %v1472
        %v1474 = vrot.slane %v1301, %v1473
        %v1475 = vlaneseq
        %v1476 = vshrl.u32 %v1475, 7
        %v1477 = vsub.s32 3, %v1476
        %v1478 = vrot.slane %v1301, %v1477
        %vm1483 = vcmp.eq.f32.partialorder %v1305, %v1466
        %vm1484 = vcmp.eq.f32.partialorder %v1305, %v1470
        %vm1485 = vcmp.eq.f32.partialorder %v1305, %v1474
        %vm1486 = vcmp.eq.f32.partialorder %v1305, %v1478
        %vm1487 = vcmp.eq.f32.partialorder %v1310, %v1466
        %vm1488 = vcmp.eq.f32.partialorder %v1310, %v1470
        %vm1489 = vcmp.eq.f32.partialorder %v1310, %v1474
        %vm1490 = vcmp.eq.f32.partialorder %v1310, %v1478
        %vm1491 = vcmp.eq.f32.partialorder %v1315, %v1466
        %vm1492 = vcmp.eq.f32.partialorder %v1315, %v1470
        %vm1493 = vcmp.eq.f32.partialorder %v1315, %v1474
        %vm1494 = vcmp.eq.f32.partialorder %v1315, %v1478
        %vm1495 = vcmp.eq.f32.partialorder %v1320, %v1466
        %vm1496 = vcmp.eq.f32.partialorder %v1320, %v1470
        %vm1497 = vcmp.eq.f32.partialorder %v1320, %v1474
        %vm1498 = vcmp.eq.f32.partialorder %v1320, %v1478
        %vm1499 = vcmp.eq.f32.partialorder %v1325, %v1466
        %vm1500 = vcmp.eq.f32.partialorder %v1325, %v1470
        %vm1501 = vcmp.eq.f32.partialorder %v1325, %v1474
        %vm1502 = vcmp.eq.f32.partialorder %v1325, %v1478
        %vm1503 = vcmp.eq.f32.partialorder %v1330, %v1466
        %vm1504 = vcmp.eq.f32.partialorder %v1330, %v1470
        %vm1505 = vcmp.eq.f32.partialorder %v1330, %v1474
        %vm1506 = vcmp.eq.f32.partialorder %v1330, %v1478
        %vm1507 = vcmp.eq.f32.partialorder %v1335, %v1466
        %vm1508 = vcmp.eq.f32.partialorder %v1335, %v1470
        %vm1509 = vcmp.eq.f32.partialorder %v1335, %v1474
        %vm1510 = vcmp.eq.f32.partialorder %v1335, %v1478
        %vm1511 = vcmp.eq.f32.partialorder %v1340, %v1466
        %vm1512 = vcmp.eq.f32.partialorder %v1340, %v1470
        %vm1513 = vcmp.eq.f32.partialorder %v1340, %v1474
        %vm1514 = vcmp.eq.f32.partialorder %v1340, %v1478
        %vm1515 = vcmp.eq.f32.partialorder %v1345, %v1466
        %vm1516 = vcmp.eq.f32.partialorder %v1345, %v1470
        %vm1517 = vcmp.eq.f32.partialorder %v1345, %v1474
        %vm1518 = vcmp.eq.f32.partialorder %v1345, %v1478
        %vm1519 = vcmp.eq.f32.partialorder %v1350, %v1466
        %vm1520 = vcmp.eq.f32.partialorder %v1350, %v1470
        %vm1521 = vcmp.eq.f32.partialorder %v1350, %v1474
        %vm1522 = vcmp.eq.f32.partialorder %v1350, %v1478
        %vm1523 = vcmp.eq.f32.partialorder %v1355, %v1466
        %vm1524 = vcmp.eq.f32.partialorder %v1355, %v1470
        %vm1525 = vcmp.eq.f32.partialorder %v1355, %v1474
        %vm1526 = vcmp.eq.f32.partialorder %v1355, %v1478
        %vm1527 = vcmp.eq.f32.partialorder %v1360, %v1466
        %vm1528 = vcmp.eq.f32.partialorder %v1360, %v1470
        %vm1529 = vcmp.eq.f32.partialorder %v1360, %v1474
        %vm1530 = vcmp.eq.f32.partialorder %v1360, %v1478
        %vm1531 = vcmp.eq.f32.partialorder %v1365, %v1466
        %vm1532 = vcmp.eq.f32.partialorder %v1365, %v1470
        %vm1533 = vcmp.eq.f32.partialorder %v1365, %v1474
        %vm1534 = vcmp.eq.f32.partialorder %v1365, %v1478
        %vm1535 = vcmp.eq.f32.partialorder %v1370, %v1466
        %vm1536 = vcmp.eq.f32.partialorder %v1370, %v1470
        %vm1537 = vcmp.eq.f32.partialorder %v1370, %v1474
        %vm1538 = vcmp.eq.f32.partialorder %v1370, %v1478
        %vm1539 = vcmp.eq.f32.partialorder %v1375, %v1466
        %vm1540 = vcmp.eq.f32.partialorder %v1375, %v1470
        %vm1541 = vcmp.eq.f32.partialorder %v1375, %v1474
        %vm1542 = vcmp.eq.f32.partialorder %v1375, %v1478
        %vm1543 = vcmp.eq.f32.partialorder %v1380, %v1466
        %vm1544 = vcmp.eq.f32.partialorder %v1380, %v1470
        %vm1545 = vcmp.eq.f32.partialorder %v1380, %v1474
        %vm1546 = vcmp.eq.f32.partialorder %v1380, %v1478
        %vm1547 = vcmp.eq.f32.partialorder %v1385, %v1466
        %vm1548 = vcmp.eq.f32.partialorder %v1385, %v1470
        %vm1549 = vcmp.eq.f32.partialorder %v1385, %v1474
        %vm1550 = vcmp.eq.f32.partialorder %v1385, %v1478
        %vm1551 = vcmp.eq.f32.partialorder %v1390, %v1466
        %vm1552 = vcmp.eq.f32.partialorder %v1390, %v1470
        %vm1553 = vcmp.eq.f32.partialorder %v1390, %v1474
        %vm1554 = vcmp.eq.f32.partialorder %v1390, %v1478
        %vm1555 = vcmp.eq.f32.partialorder %v1395, %v1466
        %vm1556 = vcmp.eq.f32.partialorder %v1395, %v1470
        %vm1557 = vcmp.eq.f32.partialorder %v1395, %v1474
        %vm1558 = vcmp.eq.f32.partialorder %v1395, %v1478
        %vm1559 = vcmp.eq.f32.partialorder %v1400, %v1466
        %vm1560 = vcmp.eq.f32.partialorder %v1400, %v1470
        %vm1561 = vcmp.eq.f32.partialorder %v1400, %v1474
        %vm1562 = vcmp.eq.f32.partialorder %v1400, %v1478
        %vm1563 = vcmp.eq.f32.partialorder %v1405, %v1466
        %vm1564 = vcmp.eq.f32.partialorder %v1405, %v1470
        %vm1565 = vcmp.eq.f32.partialorder %v1405, %v1474
        %vm1566 = vcmp.eq.f32.partialorder %v1405, %v1478
        %vm1567 = vcmp.eq.f32.partialorder %v1410, %v1466
        %vm1568 = vcmp.eq.f32.partialorder %v1410, %v1470
        %vm1569 = vcmp.eq.f32.partialorder %v1410, %v1474
        %vm1570 = vcmp.eq.f32.partialorder %v1410, %v1478
        %vm1571 = vcmp.eq.f32.partialorder %v1415, %v1466
        %vm1572 = vcmp.eq.f32.partialorder %v1415, %v1470
        %vm1573 = vcmp.eq.f32.partialorder %v1415, %v1474
        %vm1574 = vcmp.eq.f32.partialorder %v1415, %v1478
        %vm1575 = vcmp.eq.f32.partialorder %v1420, %v1466
        %vm1576 = vcmp.eq.f32.partialorder %v1420, %v1470
        %vm1577 = vcmp.eq.f32.partialorder %v1420, %v1474
        %vm1578 = vcmp.eq.f32.partialorder %v1420, %v1478
        %vm1579 = vcmp.eq.f32.partialorder %v1425, %v1466
        %vm1580 = vcmp.eq.f32.partialorder %v1425, %v1470
        %vm1581 = vcmp.eq.f32.partialorder %v1425, %v1474
        %vm1582 = vcmp.eq.f32.partialorder %v1425, %v1478
        %vm1583 = vcmp.eq.f32.partialorder %v1430, %v1466
        %vm1584 = vcmp.eq.f32.partialorder %v1430, %v1470
        %vm1585 = vcmp.eq.f32.partialorder %v1430, %v1474
        %vm1586 = vcmp.eq.f32.partialorder %v1430, %v1478
        %vm1587 = vcmp.eq.f32.partialorder %v1435, %v1466
        %vm1588 = vcmp.eq.f32.partialorder %v1435, %v1470
        %vm1589 = vcmp.eq.f32.partialorder %v1435, %v1474
        %vm1590 = vcmp.eq.f32.partialorder %v1435, %v1478
        %vm1591 = vcmp.eq.f32.partialorder %v1440, %v1466
        %vm1592 = vcmp.eq.f32.partialorder %v1440, %v1470
        %vm1593 = vcmp.eq.f32.partialorder %v1440, %v1474
        %vm1594 = vcmp.eq.f32.partialorder %v1440, %v1478
        %vm1595 = vcmp.eq.f32.partialorder %v1445, %v1466
        %vm1596 = vcmp.eq.f32.partialorder %v1445, %v1470
        %vm1597 = vcmp.eq.f32.partialorder %v1445, %v1474
        %vm1598 = vcmp.eq.f32.partialorder %v1445, %v1478
        %vm1599 = vcmp.eq.f32.partialorder %v1450, %v1466
        %vm1600 = vcmp.eq.f32.partialorder %v1450, %v1470
        %vm1601 = vcmp.eq.f32.partialorder %v1450, %v1474
        %vm1602 = vcmp.eq.f32.partialorder %v1450, %v1478
        %vm1603 = vcmp.eq.f32.partialorder %v1455, %v1466
        %vm1604 = vcmp.eq.f32.partialorder %v1455, %v1470
        %vm1605 = vcmp.eq.f32.partialorder %v1455, %v1474
        %vm1606 = vcmp.eq.f32.partialorder %v1455, %v1478
        %vm1607 = vcmp.eq.f32.partialorder %v1460, %v1466
        %vm1608 = vcmp.eq.f32.partialorder %v1460, %v1470
        %vm1609 = vcmp.eq.f32.partialorder %v1460, %v1474
        %vm1610 = vcmp.eq.f32.partialorder %v1460, %v1478
        %v1611 = vsel %vm1483, %v1014, 0.0
        %v1612 = vsel %vm1484, %v1016, 0.0
        %v1613 = vsel %vm1485, %v1018, 0.0
        %v1614 = vsel %vm1486, %v1020, 0.0
        %v1615 = vsel %vm1487, %v1022, 0.0
        %v1616 = vsel %vm1488, %v1024, 0.0
        %v1617 = vsel %vm1489, %v1026, 0.0
        %v1618 = vsel %vm1490, %v1028, 0.0
        %v1619 = vsel %vm1491, %v1030, 0.0
        %v1620 = vsel %vm1492, %v1032, 0.0
        %v1621 = vsel %vm1493, %v1034, 0.0
        %v1622 = vsel %vm1494, %v1036, 0.0
        %v1623 = vsel %vm1495, %v1038, 0.0
        %v1624 = vsel %vm1496, %v1040, 0.0
        %v1625 = vsel %vm1497, %v1042, 0.0
        %v1626 = vsel %vm1498, %v1044, 0.0
        %v1627 = vsel %vm1499, %v1046, 0.0
        %v1628 = vsel %vm1500, %v1048, 0.0
        %v1629 = vsel %vm1501, %v1050, 0.0
        %v1630 = vsel %vm1502, %v1052, 0.0
        %v1631 = vsel %vm1503, %v1054, 0.0
        %v1632 = vsel %vm1504, %v1056, 0.0
        %v1633 = vsel %vm1505, %v1058, 0.0
        %v1634 = vsel %vm1506, %v1060, 0.0
        %v1635 = vsel %vm1507, %v1062, 0.0
        %v1636 = vsel %vm1508, %v1064, 0.0
        %v1637 = vsel %vm1509, %v1066, 0.0
        %v1638 = vsel %vm1510, %v1068, 0.0
        %v1639 = vsel %vm1511, %v1070, 0.0
        %v1640 = vsel %vm1512, %v1072, 0.0
        %v1641 = vsel %vm1513, %v1074, 0.0
        %v1642 = vsel %vm1514, %v1076, 0.0
        %v1643 = vsel %vm1515, %v1078, 0.0
        %v1644 = vsel %vm1516, %v1080, 0.0
        %v1645 = vsel %vm1517, %v1082, 0.0
        %v1646 = vsel %vm1518, %v1084, 0.0
        %v1647 = vsel %vm1519, %v1086, 0.0
        %v1648 = vsel %vm1520, %v1088, 0.0
        %v1649 = vsel %vm1521, %v1090, 0.0
        %v1650 = vsel %vm1522, %v1092, 0.0
        %v1651 = vsel %vm1523, %v1094, 0.0
        %v1652 = vsel %vm1524, %v1096, 0.0
        %v1653 = vsel %vm1525, %v1098, 0.0
        %v1654 = vsel %vm1526, %v1100, 0.0
        %v1655 = vsel %vm1527, %v1102, 0.0
        %v1656 = vsel %vm1528, %v1104, 0.0
        %v1657 = vsel %vm1529, %v1106, 0.0
        %v1658 = vsel %vm1530, %v1108, 0.0
        %v1659 = vsel %vm1531, %v1110, 0.0
        %v1660 = vsel %vm1532, %v1112, 0.0
        %v1661 = vsel %vm1533, %v1114, 0.0
        %v1662 = vsel %vm1534, %v1116, 0.0
        %v1663 = vsel %vm1535, %v1118, 0.0
        %v1664 = vsel %vm1536, %v1120, 0.0
        %v1665 = vsel %vm1537, %v1122, 0.0
        %v1666 = vsel %vm1538, %v1124, 0.0
        %v1667 = vsel %vm1539, %v1126, 0.0
        %v1668 = vsel %vm1540, %v1128, 0.0
        %v1669 = vsel %vm1541, %v1130, 0.0
        %v1670 = vsel %vm1542, %v1132, 0.0
        %v1671 = vsel %vm1543, %v1134, 0.0
        %v1672 = vsel %vm1544, %v1136, 0.0
        %v1673 = vsel %vm1545, %v1138, 0.0
        %v1674 = vsel %vm1546, %v1140, 0.0
        %v1675 = vsel %vm1547, %v1142, 0.0
        %v1676 = vsel %vm1548, %v1144, 0.0
        %v1677 = vsel %vm1549, %v1146, 0.0
        %v1678 = vsel %vm1550, %v1148, 0.0
        %v1679 = vsel %vm1551, %v1150, 0.0
        %v1680 = vsel %vm1552, %v1152, 0.0
        %v1681 = vsel %vm1553, %v1154, 0.0
        %v1682 = vsel %vm1554, %v1156, 0.0
        %v1683 = vsel %vm1555, %v1158, 0.0
        %v1684 = vsel %vm1556, %v1160, 0.0
        %v1685 = vsel %vm1557, %v1162, 0.0
        %v1686 = vsel %vm1558, %v1164, 0.0
        %v1687 = vsel %vm1559, %v1166, 0.0
        %v1688 = vsel %vm1560, %v1168, 0.0
        %v1689 = vsel %vm1561, %v1170, 0.0
        %v1690 = vsel %vm1562, %v1172, 0.0
        %v1691 = vsel %vm1563, %v1174, 0.0
        %v1692 = vsel %vm1564, %v1176, 0.0
        %v1693 = vsel %vm1565, %v1178, 0.0
        %v1694 = vsel %vm1566, %v1180, 0.0
        %v1695 = vsel %vm1567, %v1182, 0.0
        %v1696 = vsel %vm1568, %v1184, 0.0
        %v1697 = vsel %vm1569, %v1186, 0.0
        %v1698 = vsel %vm1570, %v1188, 0.0
        %v1699 = vsel %vm1571, %v1190, 0.0
        %v1700 = vsel %vm1572, %v1192, 0.0
        %v1701 = vsel %vm1573, %v1194, 0.0
        %v1702 = vsel %vm1574, %v1196, 0.0
        %v1703 = vsel %vm1575, %v1198, 0.0
        %v1704 = vsel %vm1576, %v1200, 0.0
        %v1705 = vsel %vm1577, %v1202, 0.0
        %v1706 = vsel %vm1578, %v1204, 0.0
        %v1707 = vsel %vm1579, %v1206, 0.0
        %v1708 = vsel %vm1580, %v1208, 0.0
        %v1709 = vsel %vm1581, %v1210, 0.0
        %v1710 = vsel %vm1582, %v1212, 0.0
        %v1711 = vsel %vm1583, %v1214, 0.0
        %v1712 = vsel %vm1584, %v1216, 0.0
        %v1713 = vsel %vm1585, %v1218, 0.0
        %v1714 = vsel %vm1586, %v1220, 0.0
        %v1715 = vsel %vm1587, %v1222, 0.0
        %v1716 = vsel %vm1588, %v1224, 0.0
        %v1717 = vsel %vm1589, %v1226, 0.0
        %v1718 = vsel %vm1590, %v1228, 0.0
        %v1719 = vsel %vm1591, %v1230, 0.0
        %v1720 = vsel %vm1592, %v1232, 0.0
        %v1721 = vsel %vm1593, %v1234, 0.0
        %v1722 = vsel %vm1594, %v1236, 0.0
        %v1723 = vsel %vm1595, %v1238, 0.0
        %v1724 = vsel %vm1596, %v1240, 0.0
        %v1725 = vsel %vm1597, %v1242, 0.0
        %v1726 = vsel %vm1598, %v1244, 0.0
        %v1727 = vsel %vm1599, %v1246, 0.0
        %v1728 = vsel %vm1600, %v1248, 0.0
        %v1729 = vsel %vm1601, %v1250, 0.0
        %v1730 = vsel %vm1602, %v1252, 0.0
        %v1731 = vsel %vm1603, %v1254, 0.0
        %v1732 = vsel %vm1604, %v1256, 0.0
        %v1733 = vsel %vm1605, %v1258, 0.0
        %v1734 = vsel %vm1606, %v1260, 0.0
        %v1735 = vsel %vm1607, %v1262, 0.0
        %v1736 = vsel %vm1608, %v1264, 0.0
        %v1737 = vsel %vm1609, %v1266, 0.0
        %v1738 = vsel %vm1610, %v1268, 0.0
        %v1739 = vld [vmem:[#allocation3] sm:$0xf]
        %1740 = vmatprep.subr.mxu0 %v1136
        %1741 = vmatpush1.msra.mxu0 %v1134
        %1742 = vmatprep.subr.mxu0 %v1128
        %1743 = vmatpush1.msra.mxu0 %v1126
        %1744 = vmatprep.subr.mxu0 %v1120
        %1745 = vmatpush1.msra.mxu0 %v1118
        %1746 = vmatprep.subr.mxu0 %v1112
        %1747 = vmatpush1.msra.mxu0 %v1110
        %1748 = vmatprep.subr.mxu0 %v1104
        %1749 = vmatpush1.msra.mxu0 %v1102
        %1750 = vmatprep.subr.mxu0 %v1096
        %1751 = vmatpush1.msra.mxu0 %v1094
        %1752 = vmatprep.subr.mxu0 %v1088
        %1753 = vmatpush1.msra.mxu0 %v1086
        %1754 = vmatprep.subr.mxu0 %v1080
        %1755 = vmatpush1.msra.mxu0 %v1078
        %1756 = vmatprep.subr.mxu0 %v1072
        %1757 = vmatpush1.msra.mxu0 %v1070
        %1758 = vmatprep.subr.mxu0 %v1064
        %1759 = vmatpush1.msra.mxu0 %v1062
        %1760 = vmatprep.subr.mxu0 %v1056
        %1761 = vmatpush1.msra.mxu0 %v1054
        %1762 = vmatprep.subr.mxu0 %v1048
        %1763 = vmatpush1.msra.mxu0 %v1046
        %1764 = vmatprep.subr.mxu0 %v1040
        %1765 = vmatpush1.msra.mxu0 %v1038
        %1766 = vmatprep.subr.mxu0 %v1032
        %1767 = vmatpush1.msra.mxu0 %v1030
        %1768 = vmatprep.subr.mxu0 %v1024
        %1769 = vmatpush1.msra.mxu0 %v1022
        %1770 = vmatprep.subr.mxu0 %v1016
        %1771 = vmatpush1.msra.mxu0 %v1014
        %1772 = vmatprep.subr.mxu0 %v1264
        %1773 = vmatpush2.msra.mxu0 %v1262
        %1774 = vmatprep.subr.mxu0 %v1256
        %1775 = vmatpush2.msra.mxu0 %v1254
        %1776 = vmatprep.subr.mxu0 %v1248
        %1777 = vmatpush2.msra.mxu0 %v1246
        %1778 = vmatprep.subr.mxu0 %v1240
        %1779 = vmatpush2.msra.mxu0 %v1238
        %1780 = vmatprep.subr.mxu0 %v1232
        %1781 = vmatpush2.msra.mxu0 %v1230
        %1782 = vmatprep.subr.mxu0 %v1224
        %1783 = vmatpush2.msra.mxu0 %v1222
        %1784 = vmatprep.subr.mxu0 %v1216
        %1785 = vmatpush2.msra.mxu0 %v1214
        %1786 = vmatprep.subr.mxu0 %v1208
        %1787 = vmatpush2.msra.mxu0 %v1206
        %1788 = vmatprep.subr.mxu0 %v1200
        %1789 = vmatpush2.msra.mxu0 %v1198
        %1790 = vmatprep.subr.mxu0 %v1192
        %1791 = vmatpush2.msra.mxu0 %v1190
        %1792 = vmatprep.subr.mxu0 %v1184
        %1793 = vmatpush2.msra.mxu0 %v1182
        %1794 = vmatprep.subr.mxu0 %v1176
        %1795 = vmatpush2.msra.mxu0 %v1174
        %1796 = vmatprep.subr.mxu0 %v1168
        %1797 = vmatpush2.msra.mxu0 %v1166
        %1798 = vmatprep.subr.mxu0 %v1160
        %1799 = vmatpush2.msra.mxu0 %v1158
        %1800 = vmatprep.subr.mxu0 %v1152
        %1801 = vmatpush2.msra.mxu0 %v1150
        %1802 = vmatprep.subr.mxu0 %v1144
        %1803 = vmatpush2.msra.mxu0 %v1142
        %1804 = vmatprep.mubr.f32.mxu0 1.0
        %1805 = vmatmul.mubr.f32.gmra.mxu0 1.0
        %v1806 = vpop.f32.mrf.mxu0
        %v1807 = vadd.f32 0.0, %v1806
        %v1808 = vpop.f32.mrf.mxu0
        %v1809 = vadd.f32 0.0, %v1808
        %1810 = vdwg.mxu0
        %1811 = vmatprep.subr.mxu0 %v1140
        %1812 = vmatpush1.msra.mxu0 %v1138
        %1813 = vmatprep.subr.mxu0 %v1132
        %1814 = vmatpush1.msra.mxu0 %v1130
        %1815 = vmatprep.subr.mxu0 %v1124
        %1816 = vmatpush1.msra.mxu0 %v1122
        %1817 = vmatprep.subr.mxu0 %v1116
        %1818 = vmatpush1.msra.mxu0 %v1114
        %1819 = vmatprep.subr.mxu0 %v1108
        %1820 = vmatpush1.msra.mxu0 %v1106
        %1821 = vmatprep.subr.mxu0 %v1100
        %1822 = vmatpush1.msra.mxu0 %v1098
        %1823 = vmatprep.subr.mxu0 %v1092
        %1824 = vmatpush1.msra.mxu0 %v1090
        %1825 = vmatprep.subr.mxu0 %v1084
        %1826 = vmatpush1.msra.mxu0 %v1082
        %1827 = vmatprep.subr.mxu0 %v1076
        %1828 = vmatpush1.msra.mxu0 %v1074
        %1829 = vmatprep.subr.mxu0 %v1068
        %1830 = vmatpush1.msra.mxu0 %v1066
        %1831 = vmatprep.subr.mxu0 %v1060
        %1832 = vmatpush1.msra.mxu0 %v1058
        %1833 = vmatprep.subr.mxu0 %v1052
        %1834 = vmatpush1.msra.mxu0 %v1050
        %1835 = vmatprep.subr.mxu0 %v1044
        %1836 = vmatpush1.msra.mxu0 %v1042
        %1837 = vmatprep.subr.mxu0 %v1036
        %1838 = vmatpush1.msra.mxu0 %v1034
        %1839 = vmatprep.subr.mxu0 %v1028
        %1840 = vmatpush1.msra.mxu0 %v1026
        %1841 = vmatprep.subr.mxu0 %v1020
        %1842 = vmatpush1.msra.mxu0 %v1018
        %1843 = vmatprep.subr.mxu0 %v1268
        %1844 = vmatpush2.msra.mxu0 %v1266
        %1845 = vmatprep.subr.mxu0 %v1260
        %1846 = vmatpush2.msra.mxu0 %v1258
        %1847 = vmatprep.subr.mxu0 %v1252
        %1848 = vmatpush2.msra.mxu0 %v1250
        %1849 = vmatprep.subr.mxu0 %v1244
        %1850 = vmatpush2.msra.mxu0 %v1242
        %1851 = vmatprep.subr.mxu0 %v1236
        %1852 = vmatpush2.msra.mxu0 %v1234
        %1853 = vmatprep.subr.mxu0 %v1228
        %1854 = vmatpush2.msra.mxu0 %v1226
        %1855 = vmatprep.subr.mxu0 %v1220
        %1856 = vmatpush2.msra.mxu0 %v1218
        %1857 = vmatprep.subr.mxu0 %v1212
        %1858 = vmatpush2.msra.mxu0 %v1210
        %1859 = vmatprep.subr.mxu0 %v1204
        %1860 = vmatpush2.msra.mxu0 %v1202
        %1861 = vmatprep.subr.mxu0 %v1196
        %1862 = vmatpush2.msra.mxu0 %v1194
        %1863 = vmatprep.subr.mxu0 %v1188
        %1864 = vmatpush2.msra.mxu0 %v1186
        %1865 = vmatprep.subr.mxu0 %v1180
        %1866 = vmatpush2.msra.mxu0 %v1178
        %1867 = vmatprep.subr.mxu0 %v1172
        %1868 = vmatpush2.msra.mxu0 %v1170
        %1869 = vmatprep.subr.mxu0 %v1164
        %1870 = vmatpush2.msra.mxu0 %v1162
        %1871 = vmatprep.subr.mxu0 %v1156
        %1872 = vmatpush2.msra.mxu0 %v1154
        %1873 = vmatprep.subr.mxu0 %v1148
        %1874 = vmatpush2.msra.mxu0 %v1146
        %1875 = vmatprep.mubr.f32.mxu0 1.0
        %1876 = vmatmul.mubr.f32.gmra.mxu0 1.0
        %v1877 = vpop.f32.mrf.mxu0
        %v1878 = vadd.f32 0.0, %v1877
        %v1879 = vpop.f32.mrf.mxu0
        %v1880 = vadd.f32 0.0, %v1879
        %1881 = vdwg.mxu0
        %v1886 = vcombine.low %v1807, %v1809
        %v1887 = vcombine.low %v1878, %v1880
        %v1889 = vunpack.c.l.s4 1966171168
        %v1890 = vunpack.c.0.s8 %v1889
        %v1891 = vlaneseq
        %v1892 = vshrl.u32 %v1891, 7
        %v1893 = vsub.s32 %v1890, %v1892
        %v1894 = vrot.slane %v1886, %v1893
        %v1896 = vunpack.c.l.s4 1966171168
        %v1897 = vunpack.c.0.s8 %v1896
        %v1898 = vlaneseq
        %v1899 = vshrl.u32 %v1898, 7
        %v1900 = vsub.s32 %v1897, %v1899
        %v1901 = vrot.slane %v1887, %v1900
        %v1902 = vcombine.low %v1894, %v1901
        %v1904 = vunpack.c.l.s4 1966171168
        %v1905 = vunpack.c.0.s8 %v1904
        %v1906 = vlaneseq
        %v1907 = vshrl.u32 %v1906, 7
        %v1908 = vsub.s32 %v1905, %v1907
        %v1909 = vrot.slane %v1902, %v1908
        %v1911 = vadd.f32 %v1739, %v1909
        %v1912 = vlaneseq
        %vm1913 = vcmp.ge.s32.totalorder %v1912, 0
        %vm1914 = vcmp.lt.s32.totalorder %v1912, 512
        %vm1915 = vmand %vm1913, %vm1914
        %1916 = vst.msk [vmem:[#allocation3] sm:$0xf] %vm1915, %v1911
        %v1917 = vld [vmem:[#allocation2] sm:$0xf]
        %1918 = vmatprep.subr.mxu0 %v1672
        %1919 = vmatpush1.msra.mxu0 %v1671
        %1920 = vmatprep.subr.mxu0 %v1668
        %1921 = vmatpush1.msra.mxu0 %v1667
        %1922 = vmatprep.subr.mxu0 %v1664
        %1923 = vmatpush1.msra.mxu0 %v1663
        %1924 = vmatprep.subr.mxu0 %v1660
        %1925 = vmatpush1.msra.mxu0 %v1659
        %1926 = vmatprep.subr.mxu0 %v1656
        %1927 = vmatpush1.msra.mxu0 %v1655
        %1928 = vmatprep.subr.mxu0 %v1652
        %1929 = vmatpush1.msra.mxu0 %v1651
        %1930 = vmatprep.subr.mxu0 %v1648
        %1931 = vmatpush1.msra.mxu0 %v1647
        %1932 = vmatprep.subr.mxu0 %v1644
        %1933 = vmatpush1.msra.mxu0 %v1643
        %1934 = vmatprep.subr.mxu0 %v1640
        %1935 = vmatpush1.msra.mxu0 %v1639
        %1936 = vmatprep.subr.mxu0 %v1636
        %1937 = vmatpush1.msra.mxu0 %v1635
        %1938 = vmatprep.subr.mxu0 %v1632
        %1939 = vmatpush1.msra.mxu0 %v1631
        %1940 = vmatprep.subr.mxu0 %v1628
        %1941 = vmatpush1.msra.mxu0 %v1627
        %1942 = vmatprep.subr.mxu0 %v1624
        %1943 = vmatpush1.msra.mxu0 %v1623
        %1944 = vmatprep.subr.mxu0 %v1620
        %1945 = vmatpush1.msra.mxu0 %v1619
        %1946 = vmatprep.subr.mxu0 %v1616
        %1947 = vmatpush1.msra.mxu0 %v1615
        %1948 = vmatprep.subr.mxu0 %v1612
        %1949 = vmatpush1.msra.mxu0 %v1611
        %1950 = vmatprep.subr.mxu0 %v1736
        %1951 = vmatpush2.msra.mxu0 %v1735
        %1952 = vmatprep.subr.mxu0 %v1732
        %1953 = vmatpush2.msra.mxu0 %v1731
        %1954 = vmatprep.subr.mxu0 %v1728
        %1955 = vmatpush2.msra.mxu0 %v1727
        %1956 = vmatprep.subr.mxu0 %v1724
        %1957 = vmatpush2.msra.mxu0 %v1723
        %1958 = vmatprep.subr.mxu0 %v1720
        %1959 = vmatpush2.msra.mxu0 %v1719
        %1960 = vmatprep.subr.mxu0 %v1716
        %1961 = vmatpush2.msra.mxu0 %v1715
        %1962 = vmatprep.subr.mxu0 %v1712
        %1963 = vmatpush2.msra.mxu0 %v1711
        %1964 = vmatprep.subr.mxu0 %v1708
        %1965 = vmatpush2.msra.mxu0 %v1707
        %1966 = vmatprep.subr.mxu0 %v1704
        %1967 = vmatpush2.msra.mxu0 %v1703
        %1968 = vmatprep.subr.mxu0 %v1700
        %1969 = vmatpush2.msra.mxu0 %v1699
        %1970 = vmatprep.subr.mxu0 %v1696
        %1971 = vmatpush2.msra.mxu0 %v1695
        %1972 = vmatprep.subr.mxu0 %v1692
        %1973 = vmatpush2.msra.mxu0 %v1691
        %1974 = vmatprep.subr.mxu0 %v1688
        %1975 = vmatpush2.msra.mxu0 %v1687
        %1976 = vmatprep.subr.mxu0 %v1684
        %1977 = vmatpush2.msra.mxu0 %v1683
        %1978 = vmatprep.subr.mxu0 %v1680
        %1979 = vmatpush2.msra.mxu0 %v1679
        %1980 = vmatprep.subr.mxu0 %v1676
        %1981 = vmatpush2.msra.mxu0 %v1675
        %1982 = vmatprep.mubr.f32.mxu0 1.0
        %1983 = vmatmul.mubr.f32.gmra.mxu0 1.0
        %v1984 = vpop.f32.mrf.mxu0
        %v1985 = vadd.f32 0.0, %v1984
        %v1986 = vpop.f32.mrf.mxu0
        %v1987 = vadd.f32 0.0, %v1986
        %1988 = vdwg.mxu0
        %1989 = vmatprep.subr.mxu0 %v1674
        %1990 = vmatpush1.msra.mxu0 %v1673
        %1991 = vmatprep.subr.mxu0 %v1670
        %1992 = vmatpush1.msra.mxu0 %v1669
        %1993 = vmatprep.subr.mxu0 %v1666
        %1994 = vmatpush1.msra.mxu0 %v1665
        %1995 = vmatprep.subr.mxu0 %v1662
        %1996 = vmatpush1.msra.mxu0 %v1661
        %1997 = vmatprep.subr.mxu0 %v1658
        %1998 = vmatpush1.msra.mxu0 %v1657
        %1999 = vmatprep.subr.mxu0 %v1654
        %2000 = vmatpush1.msra.mxu0 %v1653
        %2001 = vmatprep.subr.mxu0 %v1650
        %2002 = vmatpush1.msra.mxu0 %v1649
        %2003 = vmatprep.subr.mxu0 %v1646
        %2004 = vmatpush1.msra.mxu0 %v1645
        %2005 = vmatprep.subr.mxu0 %v1642
        %2006 = vmatpush1.msra.mxu0 %v1641
        %2007 = vmatprep.subr.mxu0 %v1638
        %2008 = vmatpush1.msra.mxu0 %v1637
        %2009 = vmatprep.subr.mxu0 %v1634
        %2010 = vmatpush1.msra.mxu0 %v1633
        %2011 = vmatprep.subr.mxu0 %v1630
        %2012 = vmatpush1.msra.mxu0 %v1629
        %2013 = vmatprep.subr.mxu0 %v1626
        %2014 = vmatpush1.msra.mxu0 %v1625
        %2015 = vmatprep.subr.mxu0 %v1622
        %2016 = vmatpush1.msra.mxu0 %v1621
        %2017 = vmatprep.subr.mxu0 %v1618
        %2018 = vmatpush1.msra.mxu0 %v1617
        %2019 = vmatprep.subr.mxu0 %v1614
        %2020 = vmatpush1.msra.mxu0 %v1613
        %2021 = vmatprep.subr.mxu0 %v1738
        %2022 = vmatpush2.msra.mxu0 %v1737
        %2023 = vmatprep.subr.mxu0 %v1734
        %2024 = vmatpush2.msra.mxu0 %v1733
        %2025 = vmatprep.subr.mxu0 %v1730
        %2026 = vmatpush2.msra.mxu0 %v1729
        %2027 = vmatprep.subr.mxu0 %v1726
        %2028 = vmatpush2.msra.mxu0 %v1725
        %2029 = vmatprep.subr.mxu0 %v1722
        %2030 = vmatpush2.msra.mxu0 %v1721
        %2031 = vmatprep.subr.mxu0 %v1718
        %2032 = vmatpush2.msra.mxu0 %v1717
        %2033 = vmatprep.subr.mxu0 %v1714
        %2034 = vmatpush2.msra.mxu0 %v1713
        %2035 = vmatprep.subr.mxu0 %v1710
        %2036 = vmatpush2.msra.mxu0 %v1709
        %2037 = vmatprep.subr.mxu0 %v1706
        %2038 = vmatpush2.msra.mxu0 %v1705
        %2039 = vmatprep.subr.mxu0 %v1702
        %2040 = vmatpush2.msra.mxu0 %v1701
        %2041 = vmatprep.subr.mxu0 %v1698
        %2042 = vmatpush2.msra.mxu0 %v1697
        %2043 = vmatprep.subr.mxu0 %v1694
        %2044 = vmatpush2.msra.mxu0 %v1693
        %2045 = vmatprep.subr.mxu0 %v1690
        %2046 = vmatpush2.msra.mxu0 %v1689
        %2047 = vmatprep.subr.mxu0 %v1686
        %2048 = vmatpush2.msra.mxu0 %v1685
        %2049 = vmatprep.subr.mxu0 %v1682
        %2050 = vmatpush2.msra.mxu0 %v1681
        %2051 = vmatprep.subr.mxu0 %v1678
        %2052 = vmatpush2.msra.mxu0 %v1677
        %2053 = vmatprep.mubr.f32.mxu0 1.0
        %2054 = vmatmul.mubr.f32.gmra.mxu0 1.0
        %v2055 = vpop.f32.mrf.mxu0
        %v2056 = vadd.f32 0.0, %v2055
        %v2057 = vpop.f32.mrf.mxu0
        %v2058 = vadd.f32 0.0, %v2057
        %2059 = vdwg.mxu0
        %v2064 = vcombine.low %v1985, %v1987
        %v2065 = vcombine.low %v2056, %v2058
        %v2067 = vunpack.c.l.s4 1966171168
        %v2068 = vunpack.c.0.s8 %v2067
        %v2069 = vlaneseq
        %v2070 = vshrl.u32 %v2069, 7
        %v2071 = vsub.s32 %v2068, %v2070
        %v2072 = vrot.slane %v2064, %v2071
        %v2074 = vunpack.c.l.s4 1966171168
        %v2075 = vunpack.c.0.s8 %v2074
        %v2076 = vlaneseq
        %v2077 = vshrl.u32 %v2076, 7
        %v2078 = vsub.s32 %v2075, %v2077
        %v2079 = vrot.slane %v2065, %v2078
        %v2080 = vcombine.low %v2072, %v2079
        %v2082 = vunpack.c.l.s4 1966171168
        %v2083 = vunpack.c.0.s8 %v2082
        %v2084 = vlaneseq
        %v2085 = vshrl.u32 %v2084, 7
        %v2086 = vsub.s32 %v2083, %v2085
        %v2087 = vrot.slane %v2080, %v2086
        %v2089 = vadd.f32 %v1917, %v2087
        %2090 = vst.msk [vmem:[#allocation2] sm:$0xf] %vm1915, %v2089
        %p2091 = scmp.eq.s32.totalorder %s28, 1
        // Predicated region
        $region41: #{tpu_custom_call.1} parent=35 // pred_check
          %p2092 = pneg %p2091
        $region42: #{tpu_custom_call.1} parent=35 // pred_check_branch
          %2094 = sbr.rel (%p2092) target = $region44
        $region43: #{tpu_custom_call.1} parent=35 // pred_region
          %v2095 = vld [vmem:[#allocation2] sm:$0xf]
          %v2097 = vlaneseq
          %v2098 = vshrl.u32 %v2097, 7
          %v2099 = vsub.s32 0, %v2098
          %v2100 = vrot.slane %v2095, %v2099
          %v2101 = vlaneseq
          %v2102 = vshrl.u32 %v2101, 7
          %v2103 = vsub.s32 1, %v2102
          %v2104 = vrot.slane %v2095, %v2103
          %v2105 = vlaneseq
          %v2106 = vshrl.u32 %v2105, 7
          %v2107 = vsub.s32 2, %v2106
          %v2108 = vrot.slane %v2095, %v2107
          %v2109 = vlaneseq
          %v2110 = vshrl.u32 %v2109, 7
          %v2111 = vsub.s32 3, %v2110
          %v2112 = vrot.slane %v2095, %v2111
          %vm2117 = vcmask 1040384
          %v2118 = vsel %vm2117, %v2100, 0.0
          %v2119 = vsel %vm2117, %v2104, 0.0
          %v2120 = vadd.f32 %v2118, %v2119
          %v2121 = vsel %vm2117, %v2108, 0.0
          %v2122 = vadd.f32 %v2120, %v2121
          %v2123 = vsel %vm2117, %v2112, 0.0
          %v2124 = vadd.f32 %v2122, %v2123
          %2125 = vadd.xlane.f32.xlu0 %v2124
          %v2126 = vpop.xlane.xlu0 %2125
          %v2127 = vrot.slane %v2126, 4
          %v2128 = vadd.f32 %v2126, %v2127
          %v2129 = vrot.slane %v2128, 2
          %v2130 = vadd.f32 %v2128, %v2129
          %v2131 = vrot.slane %v2130, 1
          %v2132 = vadd.f32 %v2130, %v2131
          %s2133 = vtos %v2132
          %v2134 = vstv %s2133
          %2135 = vst [vmem:[%s279] sm:$0x1] %v2134
          %v2136 = vld [vmem:[#allocation3] sm:$0xf]
          %v2138 = vlaneseq
          %v2139 = vshrl.u32 %v2138, 7
          %v2140 = vsub.s32 0, %v2139
          %v2141 = vrot.slane %v2136, %v2140
          %v2142 = vlaneseq
          %v2143 = vshrl.u32 %v2142, 7
          %v2144 = vsub.s32 1, %v2143
          %v2145 = vrot.slane %v2136, %v2144
          %v2146 = vlaneseq
          %v2147 = vshrl.u32 %v2146, 7
          %v2148 = vsub.s32 2, %v2147
          %v2149 = vrot.slane %v2136, %v2148
          %v2150 = vlaneseq
          %v2151 = vshrl.u32 %v2150, 7
          %v2152 = vsub.s32 3, %v2151
          %v2153 = vrot.slane %v2136, %v2152
          %v2158 = vsel %vm2117, %v2141, 0.0
          %v2159 = vsel %vm2117, %v2145, 0.0
          %v2160 = vadd.f32 %v2158, %v2159
          %v2161 = vsel %vm2117, %v2149, 0.0
          %v2162 = vadd.f32 %v2160, %v2161
          %v2163 = vsel %vm2117, %v2153, 0.0
          %v2164 = vadd.f32 %v2162, %v2163
          %2165 = vadd.xlane.f32.xlu0 %v2164
          %v2166 = vpop.xlane.xlu0 %2165
          %v2167 = vrot.slane %v2166, 4
          %v2168 = vadd.f32 %v2166, %v2167
          %v2169 = vrot.slane %v2168, 2
          %v2170 = vadd.f32 %v2168, %v2169
          %v2171 = vrot.slane %v2170, 1
          %v2172 = vadd.f32 %v2170, %v2171
          %s2173 = vtos %v2172
          %v2174 = vstv %s2173
          %2175 = vst [vmem:[%s285] sm:$0x1] %v2174
        $region44: #{tpu_custom_call.1} parent=35 // pred_fallthru
          _
        %s2176 = sand.u32 %s147, 1
        %s2177 = scalar_lea.sflag [#allocation5], %s2176
        %s2178 = sand.u32 %s147, 1
        %s2179 = scalar_lea.vmem [#allocation4], %s2178
        %s2180 = sand.u32 %s173, 1
        %s2181 = scalar_lea.sflag [#allocation7], %s2180
        %s2182 = sand.u32 %s173, 1
        %s2183 = scalar_lea.vmem [#allocation6], %s2182
        // Predicated region
        $region45: #{tpu_custom_call.1} parent=35 // pred_check
          %p2184 = pneg %p157
        $region46: #{tpu_custom_call.1} parent=35 // pred_check_branch
          %2186 = sbr.rel (%p2184) target = $region48
        $region47: #{tpu_custom_call.1} parent=35 // pred_region
          %s2188 = ssub.s32 16, 16
          %2189 = vsyncadd %s2177, %s2188
          %s2190 = smul.addr %s27, 16
          %s2191 = scalar_lea.hbm %s4, %s2190
          %s2193 = sshll.u32 %s2179, 4
          %s2194 = int_to_ptr.vmem [resolvable:$true] %s2193
          %2196 = dma.vmem_to_hbm [thread:$0]  %s2194, 16, %s2191, %s2177
        $region48: #{tpu_custom_call.1} parent=35 // pred_fallthru
          _
        // Predicated region
        $region49: #{tpu_custom_call.1} parent=35 // pred_check
          %p2197 = pneg %p183
        $region50: #{tpu_custom_call.1} parent=35 // pred_check_branch
          %2199 = sbr.rel (%p2197) target = $region52
        $region51: #{tpu_custom_call.1} parent=35 // pred_region
          %s2201 = ssub.s32 16, 16
          %2202 = vsyncadd %s2181, %s2201
          %s2203 = smul.addr %s27, 16
          %s2204 = scalar_lea.hbm %s5, %s2203
          %s2206 = sshll.u32 %s2183, 4
          %s2207 = int_to_ptr.vmem [resolvable:$true] %s2206
          %2209 = dma.vmem_to_hbm [thread:$0]  %s2207, 16, %s2204, %s2181
        $region52: #{tpu_custom_call.1} parent=35 // pred_fallthru
          _
      $region36: #{tpu_custom_call.1} parent=5 // pred_fallthru
        _
      %p2210 = scmp.le.s32.totalorder 2, %s18
      // Predicated region
      $region53: #{tpu_custom_call.1} parent=5 // pred_check
        %p2211 = pneg %p2210
      $region54: #{tpu_custom_call.1} parent=5 // pred_check_branch
        %2213 = sbr.rel (%p2211) target = $region56
      $region55: #{tpu_custom_call.1} parent=5 // pred_region
        %s2214 = ssub.s32 %s18, 2
        // Predicated region
        $region57: #{tpu_custom_call.1} parent=55 // pred_check
          %p2215 = pneg %p163
        $region58: #{tpu_custom_call.1} parent=55 // pred_check_branch
          %2217 = sbr.rel (%p2215) target = $region60
        $region59: #{tpu_custom_call.1} parent=55 // pred_region
          %s2218 = sand.u32 %s148, 1
          %s2219 = scalar_lea.sflag [#allocation5], %s2218
          %s2220 = sand.u32 %s148, 1
          %s2221 = scalar_lea.vmem [#allocation4], %s2220
          %2222 = dma.done %s2219, 16
        $region60: #{tpu_custom_call.1} parent=55 // pred_fallthru
          _
        // Predicated region
        $region61: #{tpu_custom_call.1} parent=55 // pred_check
          %p2223 = pneg %p189
        $region62: #{tpu_custom_call.1} parent=55 // pred_check_branch
          %2225 = sbr.rel (%p2223) target = $region64
        $region63: #{tpu_custom_call.1} parent=55 // pred_region
          %s2226 = sand.u32 %s174, 1
          %s2227 = scalar_lea.sflag [#allocation7], %s2226
          %s2228 = sand.u32 %s174, 1
          %s2229 = scalar_lea.vmem [#allocation6], %s2228
          %2230 = dma.done %s2227, 16
        $region64: #{tpu_custom_call.1} parent=55 // pred_fallthru
          _
      $region56: #{tpu_custom_call.1} parent=5 // pred_fallthru
        _
    $region6: #{tpu_custom_call.1} parent=1 // loop_footer
      %s22 = sadd.s32 1, %s18
    $region7: #{tpu_custom_call.1} parent=1 // loop_footer_branch
      %17 = sbr.rel target = $region3
    $region8: #{tpu_custom_call.1} parent=1 // loop_exit
      _
    %2231 = vsyncpa [#allocation5], 1
    %s2232 = scalar_lea.sflag [#allocation5], 1
    %2233 = vsyncpa %s2232, 1
    %2234 = vsyncpa [#allocation7], 1
    %s2235 = scalar_lea.sflag [#allocation7], 1
    %2236 = vsyncpa %s2235, 1

</llo_original>
